<compile_context>
chip_gen: v7x
topology: tpu7x:2x2x1
jax: 0.10.0
libtpu: 0.0.40
codegen_flags: <defaults>
</compile_context>

<pallas_src>
from functools import partial

import jax
import jax.numpy as jnp
from jax.experimental import pallas as pl
from jax.experimental.pallas import tpu as pltpu


# --------------------------------------------------------------------------- #
# Kernel
# --------------------------------------------------------------------------- #
def dann_kernel(x_ref, w1_ref, b1_ref, w2_ref, b2_ref, w3_ref, b3_ref,
                y_ref, x3_ref, y2_ref):
    # ---- layer_input + ReLU: single K=8 MXU matmul (x/w1 zero-padded) ------
    x1 = jnp.dot(x_ref[...], w1_ref[...],
                 preferred_element_type=jnp.float32) + b1_ref[...]
    x2 = jnp.maximum(x1, 0.0)

    # ---- layer_hidden (256x256) on the MXU, bf16 in / f32 accumulate -------
    x3 = jnp.dot(x2.astype(w2_ref.dtype), w2_ref[...],
                 preferred_element_type=jnp.float32) + b2_ref[...]
    x3_ref[...] = x3.astype(x3_ref.dtype)
    x4 = jnp.maximum(x3, 0.0)

    # ---- layer_hidden2 (lane-padded classifier head) ------------------------
    y1 = jnp.dot(x4.astype(w3_ref.dtype), w3_ref[...],
                 preferred_element_type=jnp.float32) + b3_ref[...]

    # ---- two log-softmax heads sharing one max/shift ------------------------
    # Padded lanes carry y1 = -1e30 (zero weight cols + -1e30 f32 bias), so
    # they never win the max and exp() underflows to exactly 0 in both sums.
    m = jnp.max(y1, axis=-1, keepdims=True)
    s = y1 - m
    y_ref[...] = (s - jnp.log(jnp.sum(jnp.exp(s), axis=-1, keepdims=True))
                  ).astype(y_ref.dtype)
    s10 = s / 10.0
    y2_ref[...] = (s10 - jnp.log(jnp.sum(jnp.exp(s10), axis=-1, keepdims=True))
                   ).astype(y2_ref.dtype)


# --------------------------------------------------------------------------- #
# Wrapper
# --------------------------------------------------------------------------- #
def _choose_tb(batch):
    """Largest batch tile in {512, 256, 128} that still yields >= 2 grid steps
    (so the 'parallel' axis can shard across both v7x TensorCores); 128 for
    tiny batches."""
    for tb in (512, 256, 128):
        if pl.cdiv(batch, tb) >= 2:
            return tb
    return 128


def _resident_spec(shape):
    """Grid-invariant weight/bias block: VMEM-resident via (0,0) index_map,
    single-buffered when pipeline_mode is available (grid-invariant blocks
    don't need double buffering)."""
    idx = lambda i: (0, 0)
    try:
        return pl.BlockSpec(shape, idx, pipeline_mode=pl.Buffered(1))
    except (TypeError, AttributeError):
        return pl.BlockSpec(shape, idx)


@partial(jax.jit, static_argnames=("tb", "n_class", "out_dtype"))
def _dann_forward_impl(x, w1, b1, w2, b2, w3, b3, *, tb, n_class, out_dtype):
    B, n_input = x.shape
    kpad, H1 = w1.shape
    H2 = w2.shape[1]
    npad = w3.shape[1]

    # Pad batch to a multiple of the tile and the feature dim to K=8.
    bp = tb * pl.cdiv(B, tb)
    xp = jnp.zeros((bp, kpad), x.dtype).at[:B, :n_input].set(x)

    def nbytes(a):
        return int(a.size) * a.dtype.itemsize

    out_isize = jnp.dtype(out_dtype).itemsize
    flops = 2 * bp * (kpad * H1 + H1 * H2 + H2 * npad)
    transcendentals = bp * (2 * npad + 2)
    bytes_accessed = (nbytes(xp) + nbytes(w1) + nbytes(b1) + nbytes(w2)
                      + nbytes(b2) + nbytes(w3) + nbytes(b3)
                      + bp * (2 * npad + H2) * out_isize)
    cost = pl.CostEstimate(flops=flops, transcendentals=transcendentals,
                           bytes_accessed=bytes_accessed)

    y_p, x3_p, y2_p = pl.pallas_call(
        dann_kernel,
        out_shape=(
            jax.ShapeDtypeStruct((bp, npad), out_dtype),   # y  (lane-padded)
            jax.ShapeDtypeStruct((bp, H2), out_dtype),     # x3
            jax.ShapeDtypeStruct((bp, npad), out_dtype),   # y2 (lane-padded)
        ),
        grid=(bp // tb,),
        in_specs=[
            pl.BlockSpec((tb, kpad), lambda i: (i, 0)),    # x tile (streams)
            _resident_spec((kpad, H1)),                    # w1 (resident)
            _resident_spec((1, H1)),                       # b1
            _resident_spec((H1, H2)),                      # w2
            _resident_spec((1, H2)),                       # b2
            _resident_spec((H2, npad)),                    # w3 (padded)
            _resident_spec((1, npad)),                     # b3 (padded)
        ],
        out_specs=(
            pl.BlockSpec((tb, npad), lambda i: (i, 0)),
            pl.BlockSpec((tb, H2), lambda i: (i, 0)),
            pl.BlockSpec((tb, npad), lambda i: (i, 0)),
        ),
        compiler_params=pltpu.CompilerParams(
            dimension_semantics=("parallel",)),
        cost_estimate=cost,
    )(xp, w1, b1, w2, b2, w3, b3)

    return y_p[:B, :n_class], x3_p[:B], y2_p[:B, :n_class]


def dann_forward(x, prepped, tb=None, out_dtype=jnp.float32):
    """x: (B, n_input) f32.  prepped: output of prepare_params (one-time)."""
    if tb is None:
        tb = _choose_tb(x.shape[0])
    return _dann_forward_impl(
        x, prepped["w1"], prepped["b1"], prepped["w2"], prepped["b2"],
        prepped["w3"], prepped["b3"],
        tb=tb, n_class=prepped["n_class"], out_dtype=out_dtype)


# --------------------------------------------------------------------------- #
# Params (one-time prep hoisted out of the per-call path)
# --------------------------------------------------------------------------- #
def init_params(key, n_input=3, n_hidden1=256, n_hidden2=256, n_class=88):
    """Deterministic synthetic init (uniform, like torch Linear's default).
    Weights stored pre-transposed as (in, out); biases as (1, out)."""
    ks = jax.random.split(key, 6)

    def lin(kw, kb, fan_in, fan_out, w_dtype):
        bound = 1.0 / jnp.sqrt(fan_in)
        w = jax.random.uniform(kw, (fan_in, fan_out), jnp.float32, -bound, bound)
        b = jax.random.uniform(kb, (1, fan_out), jnp.float32, -bound, bound)
        return w.astype(w_dtype), b

    # w1 stays f32 (layer-1 matches the f32 reference exactly); w2/w3 bf16
    # for the MXU with f32 accumulation.  Biases stay f32.
    w1, b1 = lin(ks[0], ks[1], n_input, n_hidden1, jnp.float32)
    w2, b2 = lin(ks[2], ks[3], n_hidden1, n_hidden2, jnp.bfloat16)
    w3, b3 = lin(ks[4], ks[5], n_hidden2, n_class, jnp.bfloat16)
    return dict(w1=w1, b1=b1, w2=w2, b2=b2, w3=w3, b3=b3)


def prepare_params(params):
    """One-time layout prep: K-pad w1 to 8 rows for a single MXU matmul and
    lane-pad the classifier head to a multiple of 128 (zero weight cols,
    -1e30 f32 bias on padded lanes).  Called once, not per forward."""
    w1, b1 = params["w1"], params["b1"]
    w2, b2 = params["w2"], params["b2"]
    w3, b3 = params["w3"], params["b3"]
    n_input, H1 = w1.shape
    H2, n_class = w3.shape

    kpad = 8 * pl.cdiv(n_input, 8)
    npad = 128 * pl.cdiv(n_class, 128)

    w1p = jnp.zeros((kpad, H1), w1.dtype).at[:n_input, :].set(w1)
    w3p = jnp.zeros((H2, npad), w3.dtype).at[:, :n_class].set(w3)
    b3p = jnp.full((1, npad), -1e30, jnp.float32).at[:, :n_class].set(b3)

    return dict(w1=w1p, b1=b1, w2=w2, b2=b2, w3=w3p, b3=b3p,
                n_class=int(n_class))


def dann_ref(x, p):
    """Pure-JAX reference with the same bf16-weight / f32-accumulate math."""
    x1 = x @ p["w1"] + p["b1"]
    x2 = jax.nn.relu(x1)
    x3 = jnp.dot(x2.astype(p["w2"].dtype), p["w2"],
                 preferred_element_type=jnp.float32) + p["b2"]
    x4 = jax.nn.relu(x3)
    y1 = jnp.dot(x4.astype(p["w3"].dtype), p["w3"],
                 preferred_element_type=jnp.float32) + p["b3"]
    return (jax.nn.log_softmax(y1, axis=-1), x3,
            jax.nn.log_softmax(y1 / 10.0, axis=-1))


# --------------------------------------------------------------------------- #
# Self-test
# --------------------------------------------------------------------------- #
if __name__ == "__main__":
    key = jax.random.PRNGKey(0)
    kx, kx2, kp = jax.random.split(key, 3)

    B, n_input, n_hidden1, n_hidden2, n_class = 200, 3, 256, 256, 88
    x = jax.random.normal(kx, (B, n_input), jnp.float32)
    params = init_params(kp, n_input, n_hidden1, n_hidden2, n_class)
    prepped = prepare_params(params)   # one-time padding / layout prep

    # Small batch: TB=128, 2-step parallel grid, exercises batch padding 200->256.
    y, x3, y2 = dann_forward(x, prepped)
    jax.block_until_ready((y, x3, y2))
    assert y.shape == (B, n_class) and y2.shape == (B, n_class)
    assert x3.shape == (B, n_hidden2)

    ry, rx3, ry2 = dann_ref(x, params)
    assert jnp.allclose(y, ry, atol=1e-2, rtol=1e-2), "y mismatch"
    assert jnp.allclose(x3, rx3, atol=1e-2, rtol=1e-2), "x3 mismatch"
    assert jnp.allclose(y2, ry2, atol=1e-2, rtol=1e-2), "y2 mismatch"

    # Larger batch: exercises the TB=512 tile path (2 grid steps, 1000->1024 pad).
    B2 = 1000
    xb = jax.random.normal(kx2, (B2, n_input), jnp.float32)
    yb, x3b, y2b = dann_forward(xb, prepped)
    jax.block_until_ready((yb, x3b, y2b))
    assert yb.shape == (B2, n_class) and x3b.shape == (B2, n_hidden2)

    ryb, rx3b, ry2b = dann_ref(xb, params)
    assert jnp.allclose(yb, ryb, atol=1e-2, rtol=1e-2), "y mismatch (large B)"
    assert jnp.allclose(x3b, rx3b, atol=1e-2, rtol=1e-2), "x3 mismatch (large B)"
    assert jnp.allclose(y2b, ry2b, atol=1e-2, rtol=1e-2), "y2 mismatch (large B)"

    print("KERNEL_OK")
</pallas_src>

<mosaic_0001>
module attributes {stable_mosaic.version = 11 : i64} {
  func.func @dann_kernel(%arg0: i32, %arg1: memref<128x8xf32, #tpu.memory_space<vmem>>, %arg2: memref<8x256xf32, #tpu.memory_space<vmem>>, %arg3: memref<1x256xf32, #tpu.memory_space<vmem>>, %arg4: memref<256x256xbf16, #tpu.memory_space<vmem>>, %arg5: memref<1x256xf32, #tpu.memory_space<vmem>>, %arg6: memref<256x128xbf16, #tpu.memory_space<vmem>>, %arg7: memref<1x128xf32, #tpu.memory_space<vmem>>, %arg8: memref<128x128xf32, #tpu.memory_space<vmem>>, %arg9: memref<128x256xf32, #tpu.memory_space<vmem>>, %arg10: memref<128x128xf32, #tpu.memory_space<vmem>>) attributes {dimension_semantics = [#tpu.dimension_semantics<parallel>], iteration_bounds = array<i64: 2>, scalar_prefetch = 0 : i64, scratch_operands = 0 : i64, tpu.core_type = #tpu.core_type<tc>, window_params = [{transform_indices = @transform_0, window_bounds = array<i64: 128, 8>}, {pipeline_mode = #tpu.pipeline_mode<synchronous>, transform_indices = @transform_1, window_bounds = array<i64: 8, 256>}, {pipeline_mode = #tpu.pipeline_mode<synchronous>, transform_indices = @transform_2, window_bounds = array<i64: 1, 256>}, {pipeline_mode = #tpu.pipeline_mode<synchronous>, transform_indices = @transform_3, window_bounds = array<i64: 256, 256>}, {pipeline_mode = #tpu.pipeline_mode<synchronous>, transform_indices = @transform_4, window_bounds = array<i64: 1, 256>}, {pipeline_mode = #tpu.pipeline_mode<synchronous>, transform_indices = @transform_5, window_bounds = array<i64: 256, 128>}, {pipeline_mode = #tpu.pipeline_mode<synchronous>, transform_indices = @transform_6, window_bounds = array<i64: 1, 128>}, {transform_indices = @transform_7, window_bounds = array<i64: 128, 128>}, {transform_indices = @transform_8, window_bounds = array<i64: 128, 256>}, {transform_indices = @transform_9, window_bounds = array<i64: 128, 128>}]} {
    %c0 = arith.constant 0 : index
    %c0_0 = arith.constant 0 : index
    %0 = vector.load %arg1[%c0, %c0_0] : memref<128x8xf32, #tpu.memory_space<vmem>>, vector<128x8xf32>
    %c0_1 = arith.constant 0 : index
    %c0_2 = arith.constant 0 : index
    %1 = vector.load %arg2[%c0_1, %c0_2] : memref<8x256xf32, #tpu.memory_space<vmem>>, vector<8x256xf32>
    %cst = arith.constant dense<0.000000e+00> : vector<128x256xf32>
    %2 = tpu.matmul %0, %1, %cst {dimension_numbers = #tpu.dot_dimension_numbers<[1], [0], [0], [1], [0, 0, 1, 1], [], []>} : vector<128x8xf32>, vector<8x256xf32>, vector<128x256xf32> -> vector<128x256xf32>
    %c0_3 = arith.constant 0 : index
    %c0_4 = arith.constant 0 : index
    %3 = vector.load %arg3[%c0_3, %c0_4] : memref<1x256xf32, #tpu.memory_space<vmem>>, vector<1x256xf32>
    %4 = vector.broadcast %3 : vector<1x256xf32> to vector<128x256xf32>
    %5 = arith.addf %2, %4 : vector<128x256xf32>
    %cst_5 = arith.constant 0.000000e+00 : f32
    %6 = vector.broadcast %cst_5 : f32 to vector<128x256xf32>
    %7 = arith.maximumf %5, %6 : vector<128x256xf32>
    %8 = arith.truncf %7 : vector<128x256xf32> to vector<128x256xbf16>
    %c0_6 = arith.constant 0 : index
    %c0_7 = arith.constant 0 : index
    %9 = vector.load %arg4[%c0_6, %c0_7] : memref<256x256xbf16, #tpu.memory_space<vmem>>, vector<256x256xbf16>
    %cst_8 = arith.constant dense<0.000000e+00> : vector<128x256xf32>
    %10 = tpu.matmul %8, %9, %cst_8 {dimension_numbers = #tpu.dot_dimension_numbers<[1], [0], [0], [1], [0, 0, 1, 1], [], []>} : vector<128x256xbf16>, vector<256x256xbf16>, vector<128x256xf32> -> vector<128x256xf32>
    %c0_9 = arith.constant 0 : index
    %c0_10 = arith.constant 0 : index
    %11 = vector.load %arg5[%c0_9, %c0_10] : memref<1x256xf32, #tpu.memory_space<vmem>>, vector<1x256xf32>
    %12 = vector.broadcast %11 : vector<1x256xf32> to vector<128x256xf32>
    %13 = arith.addf %10, %12 : vector<128x256xf32>
    %c0_11 = arith.constant 0 : index
    %c0_12 = arith.constant 0 : index
    %14 = vector.load %arg9[%c0_11, %c0_12] : memref<128x256xf32, #tpu.memory_space<vmem>>, vector<128x256xf32>
    tpu.vector_store %arg9[%c0_11, %c0_12], %13 {strides = array<i32>} : memref<128x256xf32, #tpu.memory_space<vmem>>, vector<128x256xf32>,
    %cst_13 = arith.constant 0.000000e+00 : f32
    %15 = vector.broadcast %cst_13 : f32 to vector<128x256xf32>
    %16 = arith.maximumf %13, %15 : vector<128x256xf32>
    %17 = arith.truncf %16 : vector<128x256xf32> to vector<128x256xbf16>
    %c0_14 = arith.constant 0 : index
    %c0_15 = arith.constant 0 : index
    %18 = vector.load %arg6[%c0_14, %c0_15] : memref<256x128xbf16, #tpu.memory_space<vmem>>, vector<256x128xbf16>
    %cst_16 = arith.constant dense<0.000000e+00> : vector<128x128xf32>
    %19 = tpu.matmul %17, %18, %cst_16 {dimension_numbers = #tpu.dot_dimension_numbers<[1], [0], [0], [1], [0, 0, 1, 1], [], []>} : vector<128x256xbf16>, vector<256x128xbf16>, vector<128x128xf32> -> vector<128x128xf32>
    %c0_17 = arith.constant 0 : index
    %c0_18 = arith.constant 0 : index
    %20 = vector.load %arg7[%c0_17, %c0_18] : memref<1x128xf32, #tpu.memory_space<vmem>>, vector<1x128xf32>
    %21 = vector.broadcast %20 : vector<1x128xf32> to vector<128x128xf32>
    %22 = arith.addf %19, %21 : vector<128x128xf32>
    %cst_19 = arith.constant dense<0xFF800000> : vector<128xf32>
    %23 = vector.multi_reduction <maximumf>, %22, %cst_19 [1] : vector<128x128xf32> to vector<128xf32>
    %24 = vector.shape_cast %23 : vector<128xf32> to vector<128x1xf32>
    %25 = vector.broadcast %24 : vector<128x1xf32> to vector<128x128xf32>
    %26 = arith.subf %22, %25 : vector<128x128xf32>
    %27 = math.exp %26 : vector<128x128xf32>
    %cst_20 = arith.constant dense<0.000000e+00> : vector<128xf32>
    %28 = vector.multi_reduction <add>, %27, %cst_20 [1] : vector<128x128xf32> to vector<128xf32>
    %29 = vector.shape_cast %28 : vector<128xf32> to vector<128x1xf32>
    %30 = math.log %29 : vector<128x1xf32>
    %31 = vector.broadcast %30 : vector<128x1xf32> to vector<128x128xf32>
    %32 = arith.subf %26, %31 : vector<128x128xf32>
    %c0_21 = arith.constant 0 : index
    %c0_22 = arith.constant 0 : index
    %33 = vector.load %arg8[%c0_21, %c0_22] : memref<128x128xf32, #tpu.memory_space<vmem>>, vector<128x128xf32>
    tpu.vector_store %arg8[%c0_21, %c0_22], %32 {strides = array<i32>} : memref<128x128xf32, #tpu.memory_space<vmem>>, vector<128x128xf32>,
    %cst_23 = arith.constant 1.000000e+01 : f32
    %34 = vector.broadcast %cst_23 : f32 to vector<128x128xf32>
    %35 = arith.divf %26, %34 : vector<128x128xf32>
    %36 = math.exp %35 : vector<128x128xf32>
    %cst_24 = arith.constant dense<0.000000e+00> : vector<128xf32>
    %37 = vector.multi_reduction <add>, %36, %cst_24 [1] : vector<128x128xf32> to vector<128xf32>
    %38 = vector.shape_cast %37 : vector<128xf32> to vector<128x1xf32>
    %39 = math.log %38 : vector<128x1xf32>
    %40 = vector.broadcast %39 : vector<128x1xf32> to vector<128x128xf32>
    %41 = arith.subf %35, %40 : vector<128x128xf32>
    %c0_25 = arith.constant 0 : index
    %c0_26 = arith.constant 0 : index
    %42 = vector.load %arg10[%c0_25, %c0_26] : memref<128x128xf32, #tpu.memory_space<vmem>>, vector<128x128xf32>
    tpu.vector_store %arg10[%c0_25, %c0_26], %41 {strides = array<i32>} : memref<128x128xf32, #tpu.memory_space<vmem>>, vector<128x128xf32>,
    return
  }
  func.func @transform_0(%arg0: i32) -> (i32, i32) {
    %c0_i32 = arith.constant 0 : i32
    %c0_i32_0 = arith.constant 0 : i32
    return %arg0, %c0_i32 : i32, i32
  }
  func.func @transform_1(%arg0: i32) -> (i32, i32) {
    %c0_i32 = arith.constant 0 : i32
    %c0_i32_0 = arith.constant 0 : i32
    %c0_i32_1 = arith.constant 0 : i32
    return %c0_i32, %c0_i32_0 : i32, i32
  }
  func.func @transform_2(%arg0: i32) -> (i32, i32) {
    %c0_i32 = arith.constant 0 : i32
    %c0_i32_0 = arith.constant 0 : i32
    %c0_i32_1 = arith.constant 0 : i32
    return %c0_i32, %c0_i32_0 : i32, i32
  }
  func.func @transform_3(%arg0: i32) -> (i32, i32) {
    %c0_i32 = arith.constant 0 : i32
    %c0_i32_0 = arith.constant 0 : i32
    %c0_i32_1 = arith.constant 0 : i32
    return %c0_i32, %c0_i32_0 : i32, i32
  }
  func.func @transform_4(%arg0: i32) -> (i32, i32) {
    %c0_i32 = arith.constant 0 : i32
    %c0_i32_0 = arith.constant 0 : i32
    %c0_i32_1 = arith.constant 0 : i32
    return %c0_i32, %c0_i32_0 : i32, i32
  }
  func.func @transform_5(%arg0: i32) -> (i32, i32) {
    %c0_i32 = arith.constant 0 : i32
    %c0_i32_0 = arith.constant 0 : i32
    %c0_i32_1 = arith.constant 0 : i32
    return %c0_i32, %c0_i32_0 : i32, i32
  }
  func.func @transform_6(%arg0: i32) -> (i32, i32) {
    %c0_i32 = arith.constant 0 : i32
    %c0_i32_0 = arith.constant 0 : i32
    %c0_i32_1 = arith.constant 0 : i32
    return %c0_i32, %c0_i32_0 : i32, i32
  }
  func.func @transform_7(%arg0: i32) -> (i32, i32) {
    %c0_i32 = arith.constant 0 : i32
    %c0_i32_0 = arith.constant 0 : i32
    return %arg0, %c0_i32 : i32, i32
  }
  func.func @transform_8(%arg0: i32) -> (i32, i32) {
    %c0_i32 = arith.constant 0 : i32
    %c0_i32_0 = arith.constant 0 : i32
    return %arg0, %c0_i32 : i32, i32
  }
  func.func @transform_9(%arg0: i32) -> (i32, i32) {
    %c0_i32 = arith.constant 0 : i32
    %c0_i32_0 = arith.constant 0 : i32
    return %arg0, %c0_i32 : i32, i32
  }
}

</mosaic_0001>

<llo_original>
// kernel: _dann_forward_impl.1
$region0: #{_dann_forward_impl.1}
  #allocation0 [shape = 'u32[]', space=smem, size = 0x4, offset = 0x4, fixed_abs, tag = 'smem constant byte address 0x4 - core index']
  #allocation1 [shape = 'u32[144,128]{1,0:T(1,128)}', space=vmem, size = 0x12000, scoped, tag = 'internal scratch']
  %s0 = inlined_call_operand.vmem [shape: f32[256,8], index: 0, kind: input, shape index: {}]
  %s1 = inlined_call_operand.vmem [shape: f32[8,256], index: 1, kind: input, shape index: {}]
  %s2 = inlined_call_operand.vmem [shape: f32[1,256], index: 2, kind: input, shape index: {}]
  %s3 = inlined_call_operand.vmem [shape: bf16[256,256], index: 3, kind: input, shape index: {}]
  %s4 = inlined_call_operand.vmem [shape: f32[1,256], index: 4, kind: input, shape index: {}]
  %s5 = inlined_call_operand.vmem [shape: bf16[256,128], index: 5, kind: input, shape index: {}]
  %s6 = inlined_call_operand.vmem [shape: f32[1,128], index: 6, kind: input, shape index: {}]
  %s7 = inlined_call_operand.vmem [shape: f32[256,128], index: 7, kind: output, shape index: {0}]
  %s8 = inlined_call_operand.vmem [shape: f32[256,256], index: 8, kind: output, shape index: {1}]
  %s9 = inlined_call_operand.vmem [shape: f32[256,128], index: 9, kind: output, shape index: {2}]
  %10 = xla_tuple %s7, %s8, %s9
  %s11 = sld [smem:[#allocation0]]
  $region77: #{_dann_forward_impl.1} parent=0
    _
  %s13 = ssub.s32 1, %s11
  %s14 = scalar_select 0, %s13, %s11
  loop: start=0, step=1, limit=4
  $region2: #{_dann_forward_impl.1} parent=0 // loop_pre_header
    _
  $region3: #{_dann_forward_impl.1} parent=0 // loop_header
    %s16 = sphi 0, %s20
    %p17 = scmp.ge.s32.totalorder %s16, 4
    %s26 = sphi 0, %s28
    %s29 = sphi 0, %s26
    %s30 = sphi 0, %s29
    %s46 = sphi 0, %s30
    %s50 = sphi 0, %s50
    %s52 = sphi 0, %s50
    %s53 = sphi 0, %s52
    %s67 = sphi 0, %s53
    %s71 = sphi 0, %s71
    %s73 = sphi 0, %s71
    %s74 = sphi 0, %s73
    %s88 = sphi 0, %s74
    %s92 = sphi 0, %s92
    %s94 = sphi 0, %s92
    %s95 = sphi 0, %s94
    %s109 = sphi 0, %s95
    %s113 = sphi 0, %s113
    %s115 = sphi 0, %s113
    %s116 = sphi 0, %s115
    %s130 = sphi 0, %s116
    %s134 = sphi 0, %s134
    %s136 = sphi 0, %s134
    %s137 = sphi 0, %s136
    %s151 = sphi 0, %s137
    %s155 = sphi 0, %s155
    %s157 = sphi 0, %s155
    %s158 = sphi 0, %s157
    %s172 = sphi 0, %s158
    %s178 = sphi 0, %s180
    %s181 = sphi 0, %s178
    %s182 = sphi 0, %s181
    %s198 = sphi 0, %s182
    %s204 = sphi 0, %s206
    %s207 = sphi 0, %s204
    %s208 = sphi 0, %s207
    %s224 = sphi 0, %s208
    %s230 = sphi 0, %s232
    %s233 = sphi 0, %s230
    %s234 = sphi 0, %s233
    %s250 = sphi 0, %s234
  $region4: #{_dann_forward_impl.1} parent=0 // loop_header_branch
    %19 = sbr.rel (%p17) target = $region8
  $region5: #{_dann_forward_impl.1} parent=0 // loop_body
    %s21 = ssub.s32 %s16, 1
    %s22 = ssub.s32 %s16, 2
    %s23 = sadd.s32 %s16, 1
    %s24 = ssub.s32 %s16, %s23
    %p25 = scmp.eq.s32.totalorder %s24, 0
    %s27 = sadd.s32 %s26, 1
    %s28 = scalar_select %p25, %s26, %s27
    %p31 = pneg %p25
    %p32 = scmp.eq.s32.totalorder %s16, 1
    %p33 = por %p31, %p32
    %p34 = scmp.ne.s32.totalorder %s26, %s29
    %p35 = scmp.eq.s32.totalorder %s16, 0
    %p36 = por %p34, %p35
    %p37 = scmp.ne.s32.totalorder %s26, %s29
    %p38 = scmp.eq.s32.totalorder %s21, 1
    %p39 = por %p37, %p38
    %p40 = scmp.ne.s32.totalorder %s29, %s30
    %p41 = scmp.eq.s32.totalorder %s21, 0
    %p42 = por %p40, %p41
    %p43 = scmp.ne.s32.totalorder %s29, %s30
    %p44 = scmp.eq.s32.totalorder %s22, 1
    %p45 = por %p43, %p44
    %p47 = scmp.ne.s32.totalorder %s30, %s46
    %p48 = scmp.eq.s32.totalorder %s22, 0
    %p49 = por %p47, %p48
    %s51 = sadd.s32 %s50, 1
    %p54 = scmp.eq.s32.totalorder %s16, 1
    %p55 = scmp.ne.s32.totalorder %s50, %s52
    %p56 = scmp.eq.s32.totalorder %s16, 0
    %p57 = por %p55, %p56
    %p58 = scmp.ne.s32.totalorder %s50, %s52
    %p59 = scmp.eq.s32.totalorder %s21, 1
    %p60 = por %p58, %p59
    %p61 = scmp.ne.s32.totalorder %s52, %s53
    %p62 = scmp.eq.s32.totalorder %s21, 0
    %p63 = por %p61, %p62
    %p64 = scmp.ne.s32.totalorder %s52, %s53
    %p65 = scmp.eq.s32.totalorder %s22, 1
    %p66 = por %p64, %p65
    %p68 = scmp.ne.s32.totalorder %s53, %s67
    %p69 = scmp.eq.s32.totalorder %s22, 0
    %p70 = por %p68, %p69
    %s72 = sadd.s32 %s71, 1
    %p75 = scmp.eq.s32.totalorder %s16, 1
    %p76 = scmp.ne.s32.totalorder %s71, %s73
    %p77 = scmp.eq.s32.totalorder %s16, 0
    %p78 = por %p76, %p77
    %p79 = scmp.ne.s32.totalorder %s71, %s73
    %p80 = scmp.eq.s32.totalorder %s21, 1
    %p81 = por %p79, %p80
    %p82 = scmp.ne.s32.totalorder %s73, %s74
    %p83 = scmp.eq.s32.totalorder %s21, 0
    %p84 = por %p82, %p83
    %p85 = scmp.ne.s32.totalorder %s73, %s74
    %p86 = scmp.eq.s32.totalorder %s22, 1
    %p87 = por %p85, %p86
    %p89 = scmp.ne.s32.totalorder %s74, %s88
    %p90 = scmp.eq.s32.totalorder %s22, 0
    %p91 = por %p89, %p90
    %s93 = sadd.s32 %s92, 1
    %p96 = scmp.eq.s32.totalorder %s16, 1
    %p97 = scmp.ne.s32.totalorder %s92, %s94
    %p98 = scmp.eq.s32.totalorder %s16, 0
    %p99 = por %p97, %p98
    %p100 = scmp.ne.s32.totalorder %s92, %s94
    %p101 = scmp.eq.s32.totalorder %s21, 1
    %p102 = por %p100, %p101
    %p103 = scmp.ne.s32.totalorder %s94, %s95
    %p104 = scmp.eq.s32.totalorder %s21, 0
    %p105 = por %p103, %p104
    %p106 = scmp.ne.s32.totalorder %s94, %s95
    %p107 = scmp.eq.s32.totalorder %s22, 1
    %p108 = por %p106, %p107
    %p110 = scmp.ne.s32.totalorder %s95, %s109
    %p111 = scmp.eq.s32.totalorder %s22, 0
    %p112 = por %p110, %p111
    %s114 = sadd.s32 %s113, 1
    %p117 = scmp.eq.s32.totalorder %s16, 1
    %p118 = scmp.ne.s32.totalorder %s113, %s115
    %p119 = scmp.eq.s32.totalorder %s16, 0
    %p120 = por %p118, %p119
    %p121 = scmp.ne.s32.totalorder %s113, %s115
    %p122 = scmp.eq.s32.totalorder %s21, 1
    %p123 = por %p121, %p122
    %p124 = scmp.ne.s32.totalorder %s115, %s116
    %p125 = scmp.eq.s32.totalorder %s21, 0
    %p126 = por %p124, %p125
    %p127 = scmp.ne.s32.totalorder %s115, %s116
    %p128 = scmp.eq.s32.totalorder %s22, 1
    %p129 = por %p127, %p128
    %p131 = scmp.ne.s32.totalorder %s116, %s130
    %p132 = scmp.eq.s32.totalorder %s22, 0
    %p133 = por %p131, %p132
    %s135 = sadd.s32 %s134, 1
    %p138 = scmp.eq.s32.totalorder %s16, 1
    %p139 = scmp.ne.s32.totalorder %s134, %s136
    %p140 = scmp.eq.s32.totalorder %s16, 0
    %p141 = por %p139, %p140
    %p142 = scmp.ne.s32.totalorder %s134, %s136
    %p143 = scmp.eq.s32.totalorder %s21, 1
    %p144 = por %p142, %p143
    %p145 = scmp.ne.s32.totalorder %s136, %s137
    %p146 = scmp.eq.s32.totalorder %s21, 0
    %p147 = por %p145, %p146
    %p148 = scmp.ne.s32.totalorder %s136, %s137
    %p149 = scmp.eq.s32.totalorder %s22, 1
    %p150 = por %p148, %p149
    %p152 = scmp.ne.s32.totalorder %s137, %s151
    %p153 = scmp.eq.s32.totalorder %s22, 0
    %p154 = por %p152, %p153
    %s156 = sadd.s32 %s155, 1
    %p159 = scmp.eq.s32.totalorder %s16, 1
    %p160 = scmp.ne.s32.totalorder %s155, %s157
    %p161 = scmp.eq.s32.totalorder %s16, 0
    %p162 = por %p160, %p161
    %p163 = scmp.ne.s32.totalorder %s155, %s157
    %p164 = scmp.eq.s32.totalorder %s21, 1
    %p165 = por %p163, %p164
    %p166 = scmp.ne.s32.totalorder %s157, %s158
    %p167 = scmp.eq.s32.totalorder %s21, 0
    %p168 = por %p166, %p167
    %p169 = scmp.ne.s32.totalorder %s157, %s158
    %p170 = scmp.eq.s32.totalorder %s22, 1
    %p171 = por %p169, %p170
    %p173 = scmp.ne.s32.totalorder %s158, %s172
    %p174 = scmp.eq.s32.totalorder %s22, 0
    %p175 = por %p173, %p174
    %s176 = ssub.s32 %s16, %s23
    %p177 = scmp.eq.s32.totalorder %s176, 0
    %s179 = sadd.s32 %s178, 1
    %s180 = scalar_select %p177, %s178, %s179
    %p183 = pneg %p177
    %p184 = scmp.eq.s32.totalorder %s16, 1
    %p185 = por %p183, %p184
    %p186 = scmp.ne.s32.totalorder %s178, %s181
    %p187 = scmp.eq.s32.totalorder %s16, 0
    %p188 = por %p186, %p187
    %p189 = scmp.ne.s32.totalorder %s178, %s181
    %p190 = scmp.eq.s32.totalorder %s21, 1
    %p191 = por %p189, %p190
    %p192 = scmp.ne.s32.totalorder %s181, %s182
    %p193 = scmp.eq.s32.totalorder %s21, 0
    %p194 = por %p192, %p193
    %p195 = scmp.ne.s32.totalorder %s181, %s182
    %p196 = scmp.eq.s32.totalorder %s22, 1
    %p197 = por %p195, %p196
    %p199 = scmp.ne.s32.totalorder %s182, %s198
    %p200 = scmp.eq.s32.totalorder %s22, 0
    %p201 = por %p199, %p200
    %s202 = ssub.s32 %s16, %s23
    %p203 = scmp.eq.s32.totalorder %s202, 0
    %s205 = sadd.s32 %s204, 1
    %s206 = scalar_select %p203, %s204, %s205
    %p209 = pneg %p203
    %p210 = scmp.eq.s32.totalorder %s16, 1
    %p211 = por %p209, %p210
    %p212 = scmp.ne.s32.totalorder %s204, %s207
    %p213 = scmp.eq.s32.totalorder %s16, 0
    %p214 = por %p212, %p213
    %p215 = scmp.ne.s32.totalorder %s204, %s207
    %p216 = scmp.eq.s32.totalorder %s21, 1
    %p217 = por %p215, %p216
    %p218 = scmp.ne.s32.totalorder %s207, %s208
    %p219 = scmp.eq.s32.totalorder %s21, 0
    %p220 = por %p218, %p219
    %p221 = scmp.ne.s32.totalorder %s207, %s208
    %p222 = scmp.eq.s32.totalorder %s22, 1
    %p223 = por %p221, %p222
    %p225 = scmp.ne.s32.totalorder %s208, %s224
    %p226 = scmp.eq.s32.totalorder %s22, 0
    %p227 = por %p225, %p226
    %s228 = ssub.s32 %s16, %s23
    %p229 = scmp.eq.s32.totalorder %s228, 0
    %s231 = sadd.s32 %s230, 1
    %s232 = scalar_select %p229, %s230, %s231
    %p235 = pneg %p229
    %p236 = scmp.eq.s32.totalorder %s16, 1
    %p237 = por %p235, %p236
    %p238 = scmp.ne.s32.totalorder %s230, %s233
    %p239 = scmp.eq.s32.totalorder %s16, 0
    %p240 = por %p238, %p239
    %p241 = scmp.ne.s32.totalorder %s230, %s233
    %p242 = scmp.eq.s32.totalorder %s21, 1
    %p243 = por %p241, %p242
    %p244 = scmp.ne.s32.totalorder %s233, %s234
    %p245 = scmp.eq.s32.totalorder %s21, 0
    %p246 = por %p244, %p245
    %p247 = scmp.ne.s32.totalorder %s233, %s234
    %p248 = scmp.eq.s32.totalorder %s22, 1
    %p249 = por %p247, %p248
    %p251 = scmp.ne.s32.totalorder %s234, %s250
    %p252 = scmp.eq.s32.totalorder %s22, 0
    %p253 = por %p251, %p252
    %p254 = scmp.le.s32.totalorder 1, %s16
    %p255 = scmp.lt.s32.totalorder %s16, 3
    %p256 = pnand %p254, %p255
    %p257 = pneg %p256
    // Predicated region
    $region9: #{_dann_forward_impl.1} parent=5 // pred_check
      _
    $region10: #{_dann_forward_impl.1} parent=5 // pred_check_branch
      %259 = sbr.rel (%p256) target = $region12
    $region11: #{_dann_forward_impl.1} parent=5 // pred_region
      %s260 = ssub.s32 %s16, 1
      // Predicated region
      $region13: #{_dann_forward_impl.1} parent=11 // pred_check
        %p261 = pneg %p63
      $region14: #{_dann_forward_impl.1} parent=11 // pred_check_branch
        %263 = sbr.rel (%p261) target = $region16
      $region15: #{_dann_forward_impl.1} parent=11 // pred_region
        _
      $region16: #{_dann_forward_impl.1} parent=11 // pred_fallthru
        _
      // Predicated region
      $region17: #{_dann_forward_impl.1} parent=11 // pred_check
        %p264 = pneg %p84
      $region18: #{_dann_forward_impl.1} parent=11 // pred_check_branch
        %266 = sbr.rel (%p264) target = $region20
      $region19: #{_dann_forward_impl.1} parent=11 // pred_region
        _
      $region20: #{_dann_forward_impl.1} parent=11 // pred_fallthru
        _
      // Predicated region
      $region21: #{_dann_forward_impl.1} parent=11 // pred_check
        %p267 = pneg %p105
      $region22: #{_dann_forward_impl.1} parent=11 // pred_check_branch
        %269 = sbr.rel (%p267) target = $region24
      $region23: #{_dann_forward_impl.1} parent=11 // pred_region
        _
      $region24: #{_dann_forward_impl.1} parent=11 // pred_fallthru
        _
      // Predicated region
      $region25: #{_dann_forward_impl.1} parent=11 // pred_check
        %p270 = pneg %p126
      $region26: #{_dann_forward_impl.1} parent=11 // pred_check_branch
        %272 = sbr.rel (%p270) target = $region28
      $region27: #{_dann_forward_impl.1} parent=11 // pred_region
        _
      $region28: #{_dann_forward_impl.1} parent=11 // pred_fallthru
        _
      // Predicated region
      $region29: #{_dann_forward_impl.1} parent=11 // pred_check
        %p273 = pneg %p147
      $region30: #{_dann_forward_impl.1} parent=11 // pred_check_branch
        %275 = sbr.rel (%p273) target = $region32
      $region31: #{_dann_forward_impl.1} parent=11 // pred_region
        _
      $region32: #{_dann_forward_impl.1} parent=11 // pred_fallthru
        _
      // Predicated region
      $region33: #{_dann_forward_impl.1} parent=11 // pred_check
        %p276 = pneg %p168
      $region34: #{_dann_forward_impl.1} parent=11 // pred_check_branch
        %278 = sbr.rel (%p276) target = $region36
      $region35: #{_dann_forward_impl.1} parent=11 // pred_region
        _
      $region36: #{_dann_forward_impl.1} parent=11 // pred_fallthru
        _
    $region12: #{_dann_forward_impl.1} parent=5 // pred_fallthru
      _
    %p279 = scmp.lt.s32.totalorder %s16, 2
    // Predicated region
    $region37: #{_dann_forward_impl.1} parent=5 // pred_check
      %p280 = pneg %p279
    $region38: #{_dann_forward_impl.1} parent=5 // pred_check_branch
      %282 = sbr.rel (%p280) target = $region40
    $region39: #{_dann_forward_impl.1} parent=5 // pred_region
      // Predicated region
      $region41: #{_dann_forward_impl.1} parent=39 // pred_check
        %p283 = pneg %p36
      $region42: #{_dann_forward_impl.1} parent=39 // pred_check_branch
        %285 = sbr.rel (%p283) target = $region44
      $region43: #{_dann_forward_impl.1} parent=39 // pred_region
        %s286 = smul.u32 16, %s16
        %p287 = scmp.lt.s32.totalorder %s286, 31
        %s288 = scalar_select %p287, %s286, 31
        %s289 = smul.addr %s288, 8
        %s290 = scalar_lea.vmem %s0, %s289
        %s291 = smul.u32 16, %s16
      $region44: #{_dann_forward_impl.1} parent=39 // pred_fallthru
        _
    $region40: #{_dann_forward_impl.1} parent=5 // pred_fallthru
      _
    %p292 = scmp.le.s32.totalorder 1, %s16
    %p293 = scmp.lt.s32.totalorder %s16, 3
    %p294 = pnand %p292, %p293
    %p295 = pneg %p294
    // Predicated region
    $region45: #{_dann_forward_impl.1} parent=5 // pred_check
      _
    $region46: #{_dann_forward_impl.1} parent=5 // pred_check_branch
      %297 = sbr.rel (%p294) target = $region48
    $region47: #{_dann_forward_impl.1} parent=5 // pred_region
      %s298 = ssub.s32 %s16, 1
      %s299 = smul.u32 16, %s21
      %p300 = scmp.lt.s32.totalorder %s299, 31
      %s301 = scalar_select %p300, %s299, 31
      %s302 = smul.addr %s301, 8
      %s303 = scalar_lea.vmem %s0, %s302
      %p304 = pneg %p42
      %p305 = pneg %p39
      %p306 = pneg %p63
      %p307 = pneg %p60
      %p308 = pneg %p84
      %p309 = pneg %p81
      %p310 = pneg %p105
      %p311 = pneg %p102
      %p312 = pneg %p126
      %p313 = pneg %p123
      %p314 = pneg %p147
      %p315 = pneg %p144
      %p316 = pneg %p168
      %p317 = pneg %p165
      %p318 = pneg %p194
      %p319 = pneg %p191
      %s320 = smul.u32 16, %s21
      %p321 = scmp.lt.s32.totalorder %s320, 31
      %s322 = scalar_select %p321, %s320, 31
      %s323 = smul.addr %s322, 8
      %s324 = scalar_lea.vmem %s7, %s323
      %p325 = pneg %p220
      %p326 = pneg %p217
      %s327 = smul.u32 16, %s21
      %p328 = scmp.lt.s32.totalorder %s327, 31
      %s329 = scalar_select %p328, %s327, 31
      %s330 = smul.addr %s329, 2
      %s331 = smul.addr %s330, 8
      %s332 = scalar_lea.vmem %s8, %s331
      %p333 = pneg %p246
      %p334 = pneg %p243
      %s335 = smul.u32 16, %s21
      %p336 = scmp.lt.s32.totalorder %s335, 31
      %s337 = scalar_select %p336, %s335, 31
      %s338 = smul.addr %s337, 8
      %s339 = scalar_lea.vmem %s9, %s338
      %s340 = smul.u32 16, %s21
      %p341 = scmp.lt.s32.totalorder %s340, 31
      %s342 = scalar_select %p341, %s340, 31
      %s343 = smul.addr %s342, 8
      %s344 = scalar_lea.vmem %s0, %s343
      %s345 = smul.u32 16, %s21
      %s346 = smul.u32 16, %s21
      %p347 = scmp.lt.s32.totalorder %s346, 31
      %s348 = scalar_select %p347, %s346, 31
      %s349 = smul.addr %s348, 8
      %s350 = scalar_lea.vmem %s7, %s349
      %s351 = smul.u32 16, %s21
      %s352 = smul.u32 16, %s21
      %p353 = scmp.lt.s32.totalorder %s352, 31
      %s354 = scalar_select %p353, %s352, 31
      %s355 = smul.addr %s354, 2
      %s356 = smul.addr %s355, 8
      %s357 = scalar_lea.vmem %s8, %s356
      %s358 = smul.u32 16, %s21
      %s359 = smul.u32 16, %s21
      %p360 = scmp.lt.s32.totalorder %s359, 31
      %s361 = scalar_select %p360, %s359, 31
      %s362 = smul.addr %s361, 8
      %s363 = scalar_lea.vmem %s9, %s362
      %s364 = smul.u32 16, %s21
      %v366 = vld [vmem:[%s344] sm:$0xff]
      %v367 = vld [vmem:[%s344 + $0x8] sm:$0xff]
      %v368 = vld [vmem:[%s344 + $0x10] sm:$0xff]
      %v369 = vld [vmem:[%s344 + $0x18] sm:$0xff]
      %v370 = vld [vmem:[%s344 + $0x20] sm:$0xff]
      %v371 = vld [vmem:[%s344 + $0x28] sm:$0xff]
      %v372 = vld [vmem:[%s344 + $0x30] sm:$0xff]
      %v373 = vld [vmem:[%s344 + $0x38] sm:$0xff]
      %v374 = vld [vmem:[%s344 + $0x40] sm:$0xff]
      %v375 = vld [vmem:[%s344 + $0x48] sm:$0xff]
      %v376 = vld [vmem:[%s344 + $0x50] sm:$0xff]
      %v377 = vld [vmem:[%s344 + $0x58] sm:$0xff]
      %v378 = vld [vmem:[%s344 + $0x60] sm:$0xff]
      %v379 = vld [vmem:[%s344 + $0x68] sm:$0xff]
      %v380 = vld [vmem:[%s344 + $0x70] sm:$0xff]
      %v381 = vld [vmem:[%s344 + $0x78] sm:$0xff]
      %v382 = vld [vmem:[%s1] sm:$0xff]
      %v383 = vld [vmem:[%s1 + $0x8] sm:$0xff]
      %v384 = vld [vmem:[%s2] sm:$0x3]
      %v386 = vlaneseq
      %v387 = vshrl.u32 %v386, 7
      %v388 = vsub.s32 0, %v387
      %v389 = vrot.slane %v384, %v388
      %v390 = vlaneseq
      %v391 = vshrl.u32 %v390, 7
      %v392 = vsub.s32 1, %v391
      %v393 = vrot.slane %v384, %v392
      %vm396 = vcmask 64512
      %v398 = vsel %vm396, %v366, 0
      %v401 = vsel %vm396, %v367, 0
      %v404 = vsel %vm396, %v368, 0
      %v407 = vsel %vm396, %v369, 0
      %v410 = vsel %vm396, %v370, 0
      %v413 = vsel %vm396, %v371, 0
      %v416 = vsel %vm396, %v372, 0
      %v419 = vsel %vm396, %v373, 0
      %v422 = vsel %vm396, %v374, 0
      %v425 = vsel %vm396, %v375, 0
      %v428 = vsel %vm396, %v376, 0
      %v431 = vsel %vm396, %v377, 0
      %v434 = vsel %vm396, %v378, 0
      %v437 = vsel %vm396, %v379, 0
      %v440 = vsel %vm396, %v380, 0
      %v443 = vsel %vm396, %v381, 0
      %445 = vmatprep.subr.mxu0 %v383
      %446 = vmatpush1.msra.mxu0 %v382
      %447 = vmatprep.subr.mxu0 0.0
      %448 = vmatpush1.msra.mxu0 0.0
      %449 = vmatprep.subr.mxu0 0.0
      %450 = vmatpush1.msra.mxu0 0.0
      %451 = vmatprep.subr.mxu0 0.0
      %452 = vmatpush1.msra.mxu0 0.0
      %453 = vmatprep.subr.mxu0 0.0
      %454 = vmatpush1.msra.mxu0 0.0
      %455 = vmatprep.subr.mxu0 0.0
      %456 = vmatpush1.msra.mxu0 0.0
      %457 = vmatprep.subr.mxu0 0.0
      %458 = vmatpush1.msra.mxu0 0.0
      %459 = vmatprep.subr.mxu0 0.0
      %460 = vmatpush1.msra.mxu0 0.0
      %461 = vmatprep.subr.mxu0 0.0
      %462 = vmatpush1.msra.mxu0 0.0
      %463 = vmatprep.subr.mxu0 0.0
      %464 = vmatpush1.msra.mxu0 0.0
      %465 = vmatprep.subr.mxu0 0.0
      %466 = vmatpush1.msra.mxu0 0.0
      %467 = vmatprep.subr.mxu0 0.0
      %468 = vmatpush1.msra.mxu0 0.0
      %469 = vmatprep.subr.mxu0 0.0
      %470 = vmatpush1.msra.mxu0 0.0
      %471 = vmatprep.subr.mxu0 0.0
      %472 = vmatpush1.msra.mxu0 0.0
      %473 = vmatprep.subr.mxu0 0.0
      %474 = vmatpush1.msra.mxu0 0.0
      %475 = vmatprep.subr.mxu0 0.0
      %476 = vmatpush1.msra.mxu0 0.0
      %477 = vmatprep.subr.mxu0 0.0
      %478 = vmatpush1.msra.mxu0 0.0
      %479 = vmatprep.subr.mxu0 0.0
      %480 = vmatpush1.msra.mxu0 0.0
      %481 = vmatprep.subr.mxu0 0.0
      %482 = vmatpush1.msra.mxu0 0.0
      %483 = vmatprep.subr.mxu0 0.0
      %484 = vmatpush1.msra.mxu0 0.0
      %485 = vmatprep.subr.mxu0 0.0
      %486 = vmatpush1.msra.mxu0 0.0
      %487 = vmatprep.subr.mxu0 0.0
      %488 = vmatpush1.msra.mxu0 0.0
      %489 = vmatprep.subr.mxu0 0.0
      %490 = vmatpush1.msra.mxu0 0.0
      %491 = vmatprep.subr.mxu0 0.0
      %492 = vmatpush1.msra.mxu0 0.0
      %493 = vmatprep.subr.mxu0 0.0
      %494 = vmatpush1.msra.mxu0 0.0
      %495 = vmatprep.subr.mxu0 0.0
      %496 = vmatpush1.msra.mxu0 0.0
      %497 = vmatprep.subr.mxu0 0.0
      %498 = vmatpush1.msra.mxu0 0.0
      %499 = vmatprep.subr.mxu0 0.0
      %500 = vmatpush1.msra.mxu0 0.0
      %501 = vmatprep.subr.mxu0 0.0
      %502 = vmatpush1.msra.mxu0 0.0
      %503 = vmatprep.subr.mxu0 0.0
      %504 = vmatpush1.msra.mxu0 0.0
      %505 = vmatprep.subr.mxu0 0.0
      %506 = vmatpush1.msra.mxu0 0.0
      %507 = vmatprep.subr.mxu0 0.0
      %508 = vmatpush1.msra.mxu0 0.0
      %509 = vmatprep.mubr.f32.mxu0 0.0
      %510 = vmatmul.mubr.f32.gmra.mrb[0].mxu0 %v398
      %v511 = vpop.f32.mrb[0].mxu0
      %v512 = vadd.f32 %v389, %v511
      %v513 = vpop.f32.mrb[0].mxu0
      %v514 = vadd.f32 %v393, %v513
      %515 = vmatprep.mubr.f32.mxu0 0.0
      %516 = vmatmul.mubr.f32.gmra.mrb[0].mxu0 %v401
      %v517 = vpop.f32.mrb[0].mxu0
      %v518 = vadd.f32 %v389, %v517
      %v519 = vpop.f32.mrb[0].mxu0
      %v520 = vadd.f32 %v393, %v519
      %521 = vmatprep.mubr.f32.mxu0 0.0
      %522 = vmatmul.mubr.f32.gmra.mrb[0].mxu0 %v404
      %v523 = vpop.f32.mrb[0].mxu0
      %v524 = vadd.f32 %v389, %v523
      %v525 = vpop.f32.mrb[0].mxu0
      %v526 = vadd.f32 %v393, %v525
      %527 = vmatprep.mubr.f32.mxu0 0.0
      %528 = vmatmul.mubr.f32.gmra.mrb[0].mxu0 %v407
      %v529 = vpop.f32.mrb[0].mxu0
      %v530 = vadd.f32 %v389, %v529
      %v531 = vpop.f32.mrb[0].mxu0
      %v532 = vadd.f32 %v393, %v531
      %533 = vmatprep.mubr.f32.mxu0 0.0
      %534 = vmatmul.mubr.f32.gmra.mrb[0].mxu0 %v410
      %v535 = vpop.f32.mrb[0].mxu0
      %v536 = vadd.f32 %v389, %v535
      %v537 = vpop.f32.mrb[0].mxu0
      %v538 = vadd.f32 %v393, %v537
      %539 = vmatprep.mubr.f32.mxu0 0.0
      %540 = vmatmul.mubr.f32.gmra.mrb[0].mxu0 %v413
      %v541 = vpop.f32.mrb[0].mxu0
      %v542 = vadd.f32 %v389, %v541
      %v543 = vpop.f32.mrb[0].mxu0
      %v544 = vadd.f32 %v393, %v543
      %545 = vmatprep.mubr.f32.mxu0 0.0
      %546 = vmatmul.mubr.f32.gmra.mrb[0].mxu0 %v416
      %v547 = vpop.f32.mrb[0].mxu0
      %v548 = vadd.f32 %v389, %v547
      %v549 = vpop.f32.mrb[0].mxu0
      %v550 = vadd.f32 %v393, %v549
      %551 = vmatprep.mubr.f32.mxu0 0.0
      %552 = vmatmul.mubr.f32.gmra.mrb[0].mxu0 %v419
      %v553 = vpop.f32.mrb[0].mxu0
      %v554 = vadd.f32 %v389, %v553
      %v555 = vpop.f32.mrb[0].mxu0
      %v556 = vadd.f32 %v393, %v555
      %557 = vmatprep.mubr.f32.mxu0 0.0
      %558 = vmatmul.mubr.f32.gmra.mrb[0].mxu0 %v422
      %v559 = vpop.f32.mrb[0].mxu0
      %v560 = vadd.f32 %v389, %v559
      %v561 = vpop.f32.mrb[0].mxu0
      %v562 = vadd.f32 %v393, %v561
      %563 = vmatprep.mubr.f32.mxu0 0.0
      %564 = vmatmul.mubr.f32.gmra.mrb[0].mxu0 %v425
      %v565 = vpop.f32.mrb[0].mxu0
      %v566 = vadd.f32 %v389, %v565
      %v567 = vpop.f32.mrb[0].mxu0
      %v568 = vadd.f32 %v393, %v567
      %569 = vmatprep.mubr.f32.mxu0 0.0
      %570 = vmatmul.mubr.f32.gmra.mrb[0].mxu0 %v428
      %v571 = vpop.f32.mrb[0].mxu0
      %v572 = vadd.f32 %v389, %v571
      %v573 = vpop.f32.mrb[0].mxu0
      %v574 = vadd.f32 %v393, %v573
      %575 = vmatprep.mubr.f32.mxu0 0.0
      %576 = vmatmul.mubr.f32.gmra.mrb[0].mxu0 %v431
      %v577 = vpop.f32.mrb[0].mxu0
      %v578 = vadd.f32 %v389, %v577
      %v579 = vpop.f32.mrb[0].mxu0
      %v580 = vadd.f32 %v393, %v579
      %581 = vmatprep.mubr.f32.mxu0 0.0
      %582 = vmatmul.mubr.f32.gmra.mrb[0].mxu0 %v434
      %v583 = vpop.f32.mrb[0].mxu0
      %v584 = vadd.f32 %v389, %v583
      %v585 = vpop.f32.mrb[0].mxu0
      %v586 = vadd.f32 %v393, %v585
      %587 = vmatprep.mubr.f32.mxu0 0.0
      %588 = vmatmul.mubr.f32.gmra.mrb[0].mxu0 %v437
      %v589 = vpop.f32.mrb[0].mxu0
      %v590 = vadd.f32 %v389, %v589
      %v591 = vpop.f32.mrb[0].mxu0
      %v592 = vadd.f32 %v393, %v591
      %593 = vmatprep.mubr.f32.mxu0 0.0
      %594 = vmatmul.mubr.f32.gmra.mrb[0].mxu0 %v440
      %v595 = vpop.f32.mrb[0].mxu0
      %v596 = vadd.f32 %v389, %v595
      %v597 = vpop.f32.mrb[0].mxu0
      %v598 = vadd.f32 %v393, %v597
      %599 = vmatprep.mubr.f32.mxu0 0.0
      %600 = vmatmul.mubr.f32.gmra.mrb[0].mxu0 %v443
      %v601 = vpop.f32.mrb[0].mxu0
      %v602 = vadd.f32 %v389, %v601
      %v603 = vpop.f32.mrb[0].mxu0
      %v604 = vadd.f32 %v393, %v603
      %605 = vdwg.mxu0
      %v606 = vmax.f32 %v512, 0.0
      %v607 = vmax.f32 %v514, 0.0
      %v608 = vmax.f32 %v518, 0.0
      %v609 = vmax.f32 %v520, 0.0
      %v610 = vmax.f32 %v524, 0.0
      %v611 = vmax.f32 %v526, 0.0
      %v612 = vmax.f32 %v530, 0.0
      %v613 = vmax.f32 %v532, 0.0
      %v614 = vmax.f32 %v536, 0.0
      %v615 = vmax.f32 %v538, 0.0
      %v616 = vmax.f32 %v542, 0.0
      %v617 = vmax.f32 %v544, 0.0
      %v618 = vmax.f32 %v548, 0.0
      %v619 = vmax.f32 %v550, 0.0
      %v620 = vmax.f32 %v554, 0.0
      %v621 = vmax.f32 %v556, 0.0
      %v622 = vmax.f32 %v560, 0.0
      %v623 = vmax.f32 %v562, 0.0
      %v624 = vmax.f32 %v566, 0.0
      %v625 = vmax.f32 %v568, 0.0
      %v626 = vmax.f32 %v572, 0.0
      %v627 = vmax.f32 %v574, 0.0
      %v628 = vmax.f32 %v578, 0.0
      %v629 = vmax.f32 %v580, 0.0
      %v630 = vmax.f32 %v584, 0.0
      %v631 = vmax.f32 %v586, 0.0
      %v632 = vmax.f32 %v590, 0.0
      %v633 = vmax.f32 %v592, 0.0
      %v634 = vmax.f32 %v596, 0.0
      %v635 = vmax.f32 %v598, 0.0
      %v636 = vmax.f32 %v602, 0.0
      %v637 = vmax.f32 %v604, 0.0
      %v638 = vpack.c.bf16 %v608, %v606
      %v639 = vpack.c.bf16 %v609, %v607
      %v640 = vpack.c.bf16 %v612, %v610
      %v641 = vpack.c.bf16 %v613, %v611
      %v642 = vpack.c.bf16 %v616, %v614
      %v643 = vpack.c.bf16 %v617, %v615
      %v644 = vpack.c.bf16 %v620, %v618
      %v645 = vpack.c.bf16 %v621, %v619
      %v646 = vpack.c.bf16 %v624, %v622
      %v647 = vpack.c.bf16 %v625, %v623
      %v648 = vpack.c.bf16 %v628, %v626
      %v649 = vpack.c.bf16 %v629, %v627
      %v650 = vpack.c.bf16 %v632, %v630
      %v651 = vpack.c.bf16 %v633, %v631
      %v652 = vpack.c.bf16 %v636, %v634
      %v653 = vpack.c.bf16 %v637, %v635
      %v654 = vld [vmem:[%s3] sm:$0xff]
      %v655 = vld [vmem:[%s3 + $0x8] sm:$0xff]
      %v656 = vld [vmem:[%s3 + $0x10] sm:$0xff]
      %v657 = vld [vmem:[%s3 + $0x18] sm:$0xff]
      %v658 = vld [vmem:[%s3 + $0x20] sm:$0xff]
      %v659 = vld [vmem:[%s3 + $0x28] sm:$0xff]
      %v660 = vld [vmem:[%s3 + $0x30] sm:$0xff]
      %v661 = vld [vmem:[%s3 + $0x38] sm:$0xff]
      %v662 = vld [vmem:[%s3 + $0x40] sm:$0xff]
      %v663 = vld [vmem:[%s3 + $0x48] sm:$0xff]
      %v664 = vld [vmem:[%s3 + $0x50] sm:$0xff]
      %v665 = vld [vmem:[%s3 + $0x58] sm:$0xff]
      %v666 = vld [vmem:[%s3 + $0x60] sm:$0xff]
      %v667 = vld [vmem:[%s3 + $0x68] sm:$0xff]
      %v668 = vld [vmem:[%s3 + $0x70] sm:$0xff]
      %v669 = vld [vmem:[%s3 + $0x78] sm:$0xff]
      %v670 = vld [vmem:[%s3 + $0x80] sm:$0xff]
      %v671 = vld [vmem:[%s3 + $0x88] sm:$0xff]
      %v672 = vld [vmem:[%s3 + $0x90] sm:$0xff]
      %v673 = vld [vmem:[%s3 + $0x98] sm:$0xff]
      %v674 = vld [vmem:[%s3 + $0xa0] sm:$0xff]
      %v675 = vld [vmem:[%s3 + $0xa8] sm:$0xff]
      %v676 = vld [vmem:[%s3 + $0xb0] sm:$0xff]
      %v677 = vld [vmem:[%s3 + $0xb8] sm:$0xff]
      %v678 = vld [vmem:[%s3 + $0xc0] sm:$0xff]
      %v679 = vld [vmem:[%s3 + $0xc8] sm:$0xff]
      %v680 = vld [vmem:[%s3 + $0xd0] sm:$0xff]
      %v681 = vld [vmem:[%s3 + $0xd8] sm:$0xff]
      %v682 = vld [vmem:[%s3 + $0xe0] sm:$0xff]
      %v683 = vld [vmem:[%s3 + $0xe8] sm:$0xff]
      %v684 = vld [vmem:[%s3 + $0xf0] sm:$0xff]
      %v685 = vld [vmem:[%s3 + $0xf8] sm:$0xff]
      %v686 = vld [vmem:[%s4] sm:$0x3]
      %v688 = vlaneseq
      %v689 = vshrl.u32 %v688, 7
      %v690 = vsub.s32 0, %v689
      %v691 = vrot.slane %v686, %v690
      %v692 = vlaneseq
      %v693 = vshrl.u32 %v692, 7
      %v694 = vsub.s32 1, %v693
      %v695 = vrot.slane %v686, %v694
      %v730 = vunpack.c.l.b16 %v654
      %v731 = vunpack.c.h.b16 %v654
      %v732 = vunpack.c.l.b16 %v655
      %v733 = vunpack.c.h.b16 %v655
      %v734 = vunpack.c.l.b16 %v656
      %v735 = vunpack.c.h.b16 %v656
      %v736 = vunpack.c.l.b16 %v657
      %v737 = vunpack.c.h.b16 %v657
      %v738 = vunpack.c.l.b16 %v658
      %v739 = vunpack.c.h.b16 %v658
      %v740 = vunpack.c.l.b16 %v659
      %v741 = vunpack.c.h.b16 %v659
      %v742 = vunpack.c.l.b16 %v660
      %v743 = vunpack.c.h.b16 %v660
      %v744 = vunpack.c.l.b16 %v661
      %v745 = vunpack.c.h.b16 %v661
      %v746 = vunpack.c.l.b16 %v662
      %v747 = vunpack.c.h.b16 %v662
      %v748 = vunpack.c.l.b16 %v663
      %v749 = vunpack.c.h.b16 %v663
      %v750 = vunpack.c.l.b16 %v664
      %v751 = vunpack.c.h.b16 %v664
      %v752 = vunpack.c.l.b16 %v665
      %v753 = vunpack.c.h.b16 %v665
      %v754 = vunpack.c.l.b16 %v666
      %v755 = vunpack.c.h.b16 %v666
      %v756 = vunpack.c.l.b16 %v667
      %v757 = vunpack.c.h.b16 %v667
      %v758 = vunpack.c.l.b16 %v668
      %v759 = vunpack.c.h.b16 %v668
      %v760 = vunpack.c.l.b16 %v669
      %v761 = vunpack.c.h.b16 %v669
      %v762 = vunpack.c.l.b16 %v670
      %v763 = vunpack.c.h.b16 %v670
      %v764 = vunpack.c.l.b16 %v671
      %v765 = vunpack.c.h.b16 %v671
      %v766 = vunpack.c.l.b16 %v672
      %v767 = vunpack.c.h.b16 %v672
      %v768 = vunpack.c.l.b16 %v673
      %v769 = vunpack.c.h.b16 %v673
      %v770 = vunpack.c.l.b16 %v674
      %v771 = vunpack.c.h.b16 %v674
      %v772 = vunpack.c.l.b16 %v675
      %v773 = vunpack.c.h.b16 %v675
      %v774 = vunpack.c.l.b16 %v676
      %v775 = vunpack.c.h.b16 %v676
      %v776 = vunpack.c.l.b16 %v677
      %v777 = vunpack.c.h.b16 %v677
      %v778 = vunpack.c.l.b16 %v678
      %v779 = vunpack.c.h.b16 %v678
      %v780 = vunpack.c.l.b16 %v679
      %v781 = vunpack.c.h.b16 %v679
      %v782 = vunpack.c.l.b16 %v680
      %v783 = vunpack.c.h.b16 %v680
      %v784 = vunpack.c.l.b16 %v681
      %v785 = vunpack.c.h.b16 %v681
      %v786 = vunpack.c.l.b16 %v682
      %v787 = vunpack.c.h.b16 %v682
      %v788 = vunpack.c.l.b16 %v683
      %v789 = vunpack.c.h.b16 %v683
      %v790 = vunpack.c.l.b16 %v684
      %v791 = vunpack.c.h.b16 %v684
      %v792 = vunpack.c.l.b16 %v685
      %v793 = vunpack.c.h.b16 %v685
      %v794 = vpack.c.b16 %v732, %v730
      %v795 = vpack.c.b16 %v733, %v731
      %v796 = vpack.c.b16 %v736, %v734
      %v797 = vpack.c.b16 %v737, %v735
      %v798 = vpack.c.b16 %v740, %v738
      %v799 = vpack.c.b16 %v741, %v739
      %v800 = vpack.c.b16 %v744, %v742
      %v801 = vpack.c.b16 %v745, %v743
      %v802 = vpack.c.b16 %v748, %v746
      %v803 = vpack.c.b16 %v749, %v747
      %v804 = vpack.c.b16 %v752, %v750
      %v805 = vpack.c.b16 %v753, %v751
      %v806 = vpack.c.b16 %v756, %v754
      %v807 = vpack.c.b16 %v757, %v755
      %v808 = vpack.c.b16 %v760, %v758
      %v809 = vpack.c.b16 %v761, %v759
      %v810 = vpack.c.b16 %v764, %v762
      %v811 = vpack.c.b16 %v765, %v763
      %v812 = vpack.c.b16 %v768, %v766
      %v813 = vpack.c.b16 %v769, %v767
      %v814 = vpack.c.b16 %v772, %v770
      %v815 = vpack.c.b16 %v773, %v771
      %v816 = vpack.c.b16 %v776, %v774
      %v817 = vpack.c.b16 %v777, %v775
      %v818 = vpack.c.b16 %v780, %v778
      %v819 = vpack.c.b16 %v781, %v779
      %v820 = vpack.c.b16 %v784, %v782
      %v821 = vpack.c.b16 %v785, %v783
      %v822 = vpack.c.b16 %v788, %v786
      %v823 = vpack.c.b16 %v789, %v787
      %v824 = vpack.c.b16 %v792, %v790
      %v825 = vpack.c.b16 %v793, %v791
      %858 = vmatprep.subr.bf16.mxu0 %v795
      %859 = vmatpush1.bf16.msra.mxu0 %v794
      %860 = vmatprep.subr.bf16.mxu0 %v797
      %861 = vmatpush1.bf16.msra.mxu0 %v796
      %862 = vmatprep.subr.bf16.mxu0 %v799
      %863 = vmatpush1.bf16.msra.mxu0 %v798
      %864 = vmatprep.subr.bf16.mxu0 %v801
      %865 = vmatpush1.bf16.msra.mxu0 %v800
      %866 = vmatprep.subr.bf16.mxu0 %v803
      %867 = vmatpush1.bf16.msra.mxu0 %v802
      %868 = vmatprep.subr.bf16.mxu0 %v805
      %869 = vmatpush1.bf16.msra.mxu0 %v804
      %870 = vmatprep.subr.bf16.mxu0 %v807
      %871 = vmatpush1.bf16.msra.mxu0 %v806
      %872 = vmatprep.subr.bf16.mxu0 %v809
      %873 = vmatpush1.bf16.msra.mxu0 %v808
      %874 = vmatprep.subr.bf16.mxu0 %v811
      %875 = vmatpush1.bf16.msra.mxu0 %v810
      %876 = vmatprep.subr.bf16.mxu0 %v813
      %877 = vmatpush1.bf16.msra.mxu0 %v812
      %878 = vmatprep.subr.bf16.mxu0 %v815
      %879 = vmatpush1.bf16.msra.mxu0 %v814
      %880 = vmatprep.subr.bf16.mxu0 %v817
      %881 = vmatpush1.bf16.msra.mxu0 %v816
      %882 = vmatprep.subr.bf16.mxu0 %v819
      %883 = vmatpush1.bf16.msra.mxu0 %v818
      %884 = vmatprep.subr.bf16.mxu0 %v821
      %885 = vmatpush1.bf16.msra.mxu0 %v820
      %886 = vmatprep.subr.bf16.mxu0 %v823
      %887 = vmatpush1.bf16.msra.mxu0 %v822
      %888 = vmatprep.subr.bf16.mxu0 %v825
      %889 = vmatpush1.bf16.msra.mxu0 %v824
      %890 = vmatprep.mubr.bf16.mxu0 %v639
      %891 = vmatmul.mubr.bf16.gmra.mrb[0].mxu0 %v638
      %v892 = vpop.f32.mrb[0].mxu0
      %v893 = vadd.f32 %v691, %v892
      %v894 = vpop.f32.mrb[0].mxu0
      %v895 = vadd.f32 %v695, %v894
      %v896 = vpop.f32.mrb[0].mxu0
      %v897 = vadd.f32 %v691, %v896
      %v898 = vpop.f32.mrb[0].mxu0
      %v899 = vadd.f32 %v695, %v898
      %900 = vmatprep.mubr.bf16.mxu0 %v641
      %901 = vmatmul.mubr.bf16.gmra.mrb[0].mxu0 %v640
      %v902 = vpop.f32.mrb[0].mxu0
      %v903 = vadd.f32 %v691, %v902
      %v904 = vpop.f32.mrb[0].mxu0
      %v905 = vadd.f32 %v695, %v904
      %v906 = vpop.f32.mrb[0].mxu0
      %v907 = vadd.f32 %v691, %v906
      %v908 = vpop.f32.mrb[0].mxu0
      %v909 = vadd.f32 %v695, %v908
      %910 = vmatprep.mubr.bf16.mxu0 %v643
      %911 = vmatmul.mubr.bf16.gmra.mrb[0].mxu0 %v642
      %v912 = vpop.f32.mrb[0].mxu0
      %v913 = vadd.f32 %v691, %v912
      %v914 = vpop.f32.mrb[0].mxu0
      %v915 = vadd.f32 %v695, %v914
      %v916 = vpop.f32.mrb[0].mxu0
      %v917 = vadd.f32 %v691, %v916
      %v918 = vpop.f32.mrb[0].mxu0
      %v919 = vadd.f32 %v695, %v918
      %920 = vmatprep.mubr.bf16.mxu0 %v645
      %921 = vmatmul.mubr.bf16.gmra.mrb[0].mxu0 %v644
      %v922 = vpop.f32.mrb[0].mxu0
      %v923 = vadd.f32 %v691, %v922
      %v924 = vpop.f32.mrb[0].mxu0
      %v925 = vadd.f32 %v695, %v924
      %v926 = vpop.f32.mrb[0].mxu0
      %v927 = vadd.f32 %v691, %v926
      %v928 = vpop.f32.mrb[0].mxu0
      %v929 = vadd.f32 %v695, %v928
      %930 = vmatprep.mubr.bf16.mxu0 %v647
      %931 = vmatmul.mubr.bf16.gmra.mrb[0].mxu0 %v646
      %v932 = vpop.f32.mrb[0].mxu0
      %v933 = vadd.f32 %v691, %v932
      %v934 = vpop.f32.mrb[0].mxu0
      %v935 = vadd.f32 %v695, %v934
      %v936 = vpop.f32.mrb[0].mxu0
      %v937 = vadd.f32 %v691, %v936
      %v938 = vpop.f32.mrb[0].mxu0
      %v939 = vadd.f32 %v695, %v938
      %940 = vmatprep.mubr.bf16.mxu0 %v649
      %941 = vmatmul.mubr.bf16.gmra.mrb[0].mxu0 %v648
      %v942 = vpop.f32.mrb[0].mxu0
      %v943 = vadd.f32 %v691, %v942
      %v944 = vpop.f32.mrb[0].mxu0
      %v945 = vadd.f32 %v695, %v944
      %v946 = vpop.f32.mrb[0].mxu0
      %v947 = vadd.f32 %v691, %v946
      %v948 = vpop.f32.mrb[0].mxu0
      %v949 = vadd.f32 %v695, %v948
      %950 = vmatprep.mubr.bf16.mxu0 %v651
      %951 = vmatmul.mubr.bf16.gmra.mrb[0].mxu0 %v650
      %v952 = vpop.f32.mrb[0].mxu0
      %v953 = vadd.f32 %v691, %v952
      %v954 = vpop.f32.mrb[0].mxu0
      %v955 = vadd.f32 %v695, %v954
      %v956 = vpop.f32.mrb[0].mxu0
      %v957 = vadd.f32 %v691, %v956
      %v958 = vpop.f32.mrb[0].mxu0
      %v959 = vadd.f32 %v695, %v958
      %960 = vmatprep.mubr.bf16.mxu0 %v653
      %961 = vmatmul.mubr.bf16.gmra.mrb[0].mxu0 %v652
      %v962 = vpop.f32.mrb[0].mxu0
      %v963 = vadd.f32 %v691, %v962
      %v964 = vpop.f32.mrb[0].mxu0
      %v965 = vadd.f32 %v695, %v964
      %v966 = vpop.f32.mrb[0].mxu0
      %v967 = vadd.f32 %v691, %v966
      %v968 = vpop.f32.mrb[0].mxu0
      %v969 = vadd.f32 %v695, %v968
      %970 = vdwg.mxu0
      %971 = vst [vmem:[%s357] sm:$0xff] %v893
      %972 = vst [vmem:[%s357 + $0x8] sm:$0xff] %v895
      %973 = vst [vmem:[%s357 + $0x10] sm:$0xff] %v897
      %974 = vst [vmem:[%s357 + $0x18] sm:$0xff] %v899
      %975 = vst [vmem:[%s357 + $0x20] sm:$0xff] %v903
      %976 = vst [vmem:[%s357 + $0x28] sm:$0xff] %v905
      %977 = vst [vmem:[%s357 + $0x30] sm:$0xff] %v907
      %978 = vst [vmem:[%s357 + $0x38] sm:$0xff] %v909
      %979 = vst [vmem:[%s357 + $0x40] sm:$0xff] %v913
      %980 = vst [vmem:[%s357 + $0x48] sm:$0xff] %v915
      %981 = vst [vmem:[%s357 + $0x50] sm:$0xff] %v917
      %982 = vst [vmem:[%s357 + $0x58] sm:$0xff] %v919
      %983 = vst [vmem:[%s357 + $0x60] sm:$0xff] %v923
      %984 = vst [vmem:[%s357 + $0x68] sm:$0xff] %v925
      %985 = vst [vmem:[%s357 + $0x70] sm:$0xff] %v927
      %986 = vst [vmem:[%s357 + $0x78] sm:$0xff] %v929
      %987 = vst [vmem:[%s357 + $0x80] sm:$0xff] %v933
      %988 = vst [vmem:[%s357 + $0x88] sm:$0xff] %v935
      %989 = vst [vmem:[%s357 + $0x90] sm:$0xff] %v937
      %990 = vst [vmem:[%s357 + $0x98] sm:$0xff] %v939
      %991 = vst [vmem:[%s357 + $0xa0] sm:$0xff] %v943
      %992 = vst [vmem:[%s357 + $0xa8] sm:$0xff] %v945
      %993 = vst [vmem:[%s357 + $0xb0] sm:$0xff] %v947
      %994 = vst [vmem:[%s357 + $0xb8] sm:$0xff] %v949
      %995 = vst [vmem:[%s357 + $0xc0] sm:$0xff] %v953
      %996 = vst [vmem:[%s357 + $0xc8] sm:$0xff] %v955
      %997 = vst [vmem:[%s357 + $0xd0] sm:$0xff] %v957
      %998 = vst [vmem:[%s357 + $0xd8] sm:$0xff] %v959
      %999 = vst [vmem:[%s357 + $0xe0] sm:$0xff] %v963
      %1000 = vst [vmem:[%s357 + $0xe8] sm:$0xff] %v965
      %1001 = vst [vmem:[%s357 + $0xf0] sm:$0xff] %v967
      %1002 = vst [vmem:[%s357 + $0xf8] sm:$0xff] %v969
      %v1003 = vmax.f32 %v893, 0.0
      %v1004 = vmax.f32 %v895, 0.0
      %v1005 = vmax.f32 %v897, 0.0
      %v1006 = vmax.f32 %v899, 0.0
      %v1007 = vmax.f32 %v903, 0.0
      %v1008 = vmax.f32 %v905, 0.0
      %v1009 = vmax.f32 %v907, 0.0
      %v1010 = vmax.f32 %v909, 0.0
      %v1011 = vmax.f32 %v913, 0.0
      %v1012 = vmax.f32 %v915, 0.0
      %v1013 = vmax.f32 %v917, 0.0
      %v1014 = vmax.f32 %v919, 0.0
      %v1015 = vmax.f32 %v923, 0.0
      %v1016 = vmax.f32 %v925, 0.0
      %v1017 = vmax.f32 %v927, 0.0
      %v1018 = vmax.f32 %v929, 0.0
      %v1019 = vmax.f32 %v933, 0.0
      %v1020 = vmax.f32 %v935, 0.0
      %v1021 = vmax.f32 %v937, 0.0
      %v1022 = vmax.f32 %v939, 0.0
      %v1023 = vmax.f32 %v943, 0.0
      %v1024 = vmax.f32 %v945, 0.0
      %v1025 = vmax.f32 %v947, 0.0
      %v1026 = vmax.f32 %v949, 0.0
      %v1027 = vmax.f32 %v953, 0.0
      %v1028 = vmax.f32 %v955, 0.0
      %v1029 = vmax.f32 %v957, 0.0
      %v1030 = vmax.f32 %v959, 0.0
      %v1031 = vmax.f32 %v963, 0.0
      %v1032 = vmax.f32 %v965, 0.0
      %v1033 = vmax.f32 %v967, 0.0
      %v1034 = vmax.f32 %v969, 0.0
      %v1035 = vpack.c.bf16 %v1005, %v1003
      %v1036 = vpack.c.bf16 %v1006, %v1004
      %v1037 = vpack.c.bf16 %v1009, %v1007
      %v1038 = vpack.c.bf16 %v1010, %v1008
      %v1039 = vpack.c.bf16 %v1013, %v1011
      %v1040 = vpack.c.bf16 %v1014, %v1012
      %v1041 = vpack.c.bf16 %v1017, %v1015
      %v1042 = vpack.c.bf16 %v1018, %v1016
      %v1043 = vpack.c.bf16 %v1021, %v1019
      %v1044 = vpack.c.bf16 %v1022, %v1020
      %v1045 = vpack.c.bf16 %v1025, %v1023
      %v1046 = vpack.c.bf16 %v1026, %v1024
      %v1047 = vpack.c.bf16 %v1029, %v1027
      %v1048 = vpack.c.bf16 %v1030, %v1028
      %v1049 = vpack.c.bf16 %v1033, %v1031
      %v1050 = vpack.c.bf16 %v1034, %v1032
      %v1051 = vld [vmem:[%s5] sm:$0xf]
      %v1052 = vld [vmem:[%s5 + $0x4] sm:$0xf]
      %v1053 = vld [vmem:[%s5 + $0x8] sm:$0xf]
      %v1054 = vld [vmem:[%s5 + $0xc] sm:$0xf]
      %v1055 = vld [vmem:[%s5 + $0x10] sm:$0xf]
      %v1056 = vld [vmem:[%s5 + $0x14] sm:$0xf]
      %v1057 = vld [vmem:[%s5 + $0x18] sm:$0xf]
      %v1058 = vld [vmem:[%s5 + $0x1c] sm:$0xf]
      %v1059 = vld [vmem:[%s5 + $0x20] sm:$0xf]
      %v1060 = vld [vmem:[%s5 + $0x24] sm:$0xf]
      %v1061 = vld [vmem:[%s5 + $0x28] sm:$0xf]
      %v1062 = vld [vmem:[%s5 + $0x2c] sm:$0xf]
      %v1063 = vld [vmem:[%s5 + $0x30] sm:$0xf]
      %v1064 = vld [vmem:[%s5 + $0x34] sm:$0xf]
      %v1065 = vld [vmem:[%s5 + $0x38] sm:$0xf]
      %v1066 = vld [vmem:[%s5 + $0x3c] sm:$0xf]
      %v1067 = vld [vmem:[%s5 + $0x40] sm:$0xf]
      %v1068 = vld [vmem:[%s5 + $0x44] sm:$0xf]
      %v1069 = vld [vmem:[%s5 + $0x48] sm:$0xf]
      %v1070 = vld [vmem:[%s5 + $0x4c] sm:$0xf]
      %v1071 = vld [vmem:[%s5 + $0x50] sm:$0xf]
      %v1072 = vld [vmem:[%s5 + $0x54] sm:$0xf]
      %v1073 = vld [vmem:[%s5 + $0x58] sm:$0xf]
      %v1074 = vld [vmem:[%s5 + $0x5c] sm:$0xf]
      %v1075 = vld [vmem:[%s5 + $0x60] sm:$0xf]
      %v1076 = vld [vmem:[%s5 + $0x64] sm:$0xf]
      %v1077 = vld [vmem:[%s5 + $0x68] sm:$0xf]
      %v1078 = vld [vmem:[%s5 + $0x6c] sm:$0xf]
      %v1079 = vld [vmem:[%s5 + $0x70] sm:$0xf]
      %v1080 = vld [vmem:[%s5 + $0x74] sm:$0xf]
      %v1081 = vld [vmem:[%s5 + $0x78] sm:$0xf]
      %v1082 = vld [vmem:[%s5 + $0x7c] sm:$0xf]
      %v1083 = vld [vmem:[%s6] sm:$0x1]
      %v1085 = vlaneseq
      %v1086 = vshrl.u32 %v1085, 7
      %v1087 = vsub.s32 0, %v1086
      %v1088 = vrot.slane %v1083, %v1087
      %v1122 = vunpack.c.l.b16 %v1051
      %v1123 = vunpack.c.l.b16 %v1052
      %v1124 = vunpack.c.l.b16 %v1053
      %v1125 = vunpack.c.l.b16 %v1054
      %v1126 = vunpack.c.l.b16 %v1055
      %v1127 = vunpack.c.l.b16 %v1056
      %v1128 = vunpack.c.l.b16 %v1057
      %v1129 = vunpack.c.l.b16 %v1058
      %v1130 = vunpack.c.l.b16 %v1059
      %v1131 = vunpack.c.l.b16 %v1060
      %v1132 = vunpack.c.l.b16 %v1061
      %v1133 = vunpack.c.l.b16 %v1062
      %v1134 = vunpack.c.l.b16 %v1063
      %v1135 = vunpack.c.l.b16 %v1064
      %v1136 = vunpack.c.l.b16 %v1065
      %v1137 = vunpack.c.l.b16 %v1066
      %v1138 = vunpack.c.l.b16 %v1067
      %v1139 = vunpack.c.l.b16 %v1068
      %v1140 = vunpack.c.l.b16 %v1069
      %v1141 = vunpack.c.l.b16 %v1070
      %v1142 = vunpack.c.l.b16 %v1071
      %v1143 = vunpack.c.l.b16 %v1072
      %v1144 = vunpack.c.l.b16 %v1073
      %v1145 = vunpack.c.l.b16 %v1074
      %v1146 = vunpack.c.l.b16 %v1075
      %v1147 = vunpack.c.l.b16 %v1076
      %v1148 = vunpack.c.l.b16 %v1077
      %v1149 = vunpack.c.l.b16 %v1078
      %v1150 = vunpack.c.l.b16 %v1079
      %v1151 = vunpack.c.l.b16 %v1080
      %v1152 = vunpack.c.l.b16 %v1081
      %v1153 = vunpack.c.l.b16 %v1082
      %v1154 = vpack.c.b16 %v1123, %v1122
      %v1155 = vpack.c.b16 %v1125, %v1124
      %v1156 = vpack.c.b16 %v1127, %v1126
      %v1157 = vpack.c.b16 %v1129, %v1128
      %v1158 = vpack.c.b16 %v1131, %v1130
      %v1159 = vpack.c.b16 %v1133, %v1132
      %v1160 = vpack.c.b16 %v1135, %v1134
      %v1161 = vpack.c.b16 %v1137, %v1136
      %v1162 = vpack.c.b16 %v1139, %v1138
      %v1163 = vpack.c.b16 %v1141, %v1140
      %v1164 = vpack.c.b16 %v1143, %v1142
      %v1165 = vpack.c.b16 %v1145, %v1144
      %v1166 = vpack.c.b16 %v1147, %v1146
      %v1167 = vpack.c.b16 %v1149, %v1148
      %v1168 = vpack.c.b16 %v1151, %v1150
      %v1169 = vpack.c.b16 %v1153, %v1152
      %1186 = vmatprep.subr.bf16.mxu0 0
      %1187 = vmatpush1.bf16.msra.mxu0 %v1154
      %1188 = vmatprep.subr.bf16.mxu0 0
      %1189 = vmatpush1.bf16.msra.mxu0 %v1155
      %1190 = vmatprep.subr.bf16.mxu0 0
      %1191 = vmatpush1.bf16.msra.mxu0 %v1156
      %1192 = vmatprep.subr.bf16.mxu0 0
      %1193 = vmatpush1.bf16.msra.mxu0 %v1157
      %1194 = vmatprep.subr.bf16.mxu0 0
      %1195 = vmatpush1.bf16.msra.mxu0 %v1158
      %1196 = vmatprep.subr.bf16.mxu0 0
      %1197 = vmatpush1.bf16.msra.mxu0 %v1159
      %1198 = vmatprep.subr.bf16.mxu0 0
      %1199 = vmatpush1.bf16.msra.mxu0 %v1160
      %1200 = vmatprep.subr.bf16.mxu0 0
      %1201 = vmatpush1.bf16.msra.mxu0 %v1161
      %1202 = vmatprep.subr.bf16.mxu0 0
      %1203 = vmatpush1.bf16.msra.mxu0 %v1162
      %1204 = vmatprep.subr.bf16.mxu0 0
      %1205 = vmatpush1.bf16.msra.mxu0 %v1163
      %1206 = vmatprep.subr.bf16.mxu0 0
      %1207 = vmatpush1.bf16.msra.mxu0 %v1164
      %1208 = vmatprep.subr.bf16.mxu0 0
      %1209 = vmatpush1.bf16.msra.mxu0 %v1165
      %1210 = vmatprep.subr.bf16.mxu0 0
      %1211 = vmatpush1.bf16.msra.mxu0 %v1166
      %1212 = vmatprep.subr.bf16.mxu0 0
      %1213 = vmatpush1.bf16.msra.mxu0 %v1167
      %1214 = vmatprep.subr.bf16.mxu0 0
      %1215 = vmatpush1.bf16.msra.mxu0 %v1168
      %1216 = vmatprep.subr.bf16.mxu0 0
      %1217 = vmatpush1.bf16.msra.mxu0 %v1169
      %1218 = vmatprep.mubr.bf16.mxu0 %v1036
      %1219 = vmatmul.mubr.bf16.gmra.mrb[0].mxu0 %v1035
      %v1220 = vpop.f32.mrb[0].mxu0
      %v1221 = vadd.f32 %v1088, %v1220
      %v1222 = vpop.f32.mrb[0].mxu0
      %v1223 = vpop.f32.mrb[0].mxu0
      %v1224 = vadd.f32 %v1088, %v1223
      %v1225 = vpop.f32.mrb[0].mxu0
      %1226 = vmatprep.mubr.bf16.mxu0 %v1038
      %1227 = vmatmul.mubr.bf16.gmra.mrb[0].mxu0 %v1037
      %v1228 = vpop.f32.mrb[0].mxu0
      %v1229 = vadd.f32 %v1088, %v1228
      %v1230 = vpop.f32.mrb[0].mxu0
      %v1231 = vpop.f32.mrb[0].mxu0
      %v1232 = vadd.f32 %v1088, %v1231
      %v1233 = vpop.f32.mrb[0].mxu0
      %1234 = vmatprep.mubr.bf16.mxu0 %v1040
      %1235 = vmatmul.mubr.bf16.gmra.mrb[0].mxu0 %v1039
      %v1236 = vpop.f32.mrb[0].mxu0
      %v1237 = vadd.f32 %v1088, %v1236
      %v1238 = vpop.f32.mrb[0].mxu0
      %v1239 = vpop.f32.mrb[0].mxu0
      %v1240 = vadd.f32 %v1088, %v1239
      %v1241 = vpop.f32.mrb[0].mxu0
      %1242 = vmatprep.mubr.bf16.mxu0 %v1042
      %1243 = vmatmul.mubr.bf16.gmra.mrb[0].mxu0 %v1041
      %v1244 = vpop.f32.mrb[0].mxu0
      %v1245 = vadd.f32 %v1088, %v1244
      %v1246 = vpop.f32.mrb[0].mxu0
      %v1247 = vpop.f32.mrb[0].mxu0
      %v1248 = vadd.f32 %v1088, %v1247
      %v1249 = vpop.f32.mrb[0].mxu0
      %1250 = vmatprep.mubr.bf16.mxu0 %v1044
      %1251 = vmatmul.mubr.bf16.gmra.mrb[0].mxu0 %v1043
      %v1252 = vpop.f32.mrb[0].mxu0
      %v1253 = vadd.f32 %v1088, %v1252
      %v1254 = vpop.f32.mrb[0].mxu0
      %v1255 = vpop.f32.mrb[0].mxu0
      %v1256 = vadd.f32 %v1088, %v1255
      %v1257 = vpop.f32.mrb[0].mxu0
      %1258 = vmatprep.mubr.bf16.mxu0 %v1046
      %1259 = vmatmul.mubr.bf16.gmra.mrb[0].mxu0 %v1045
      %v1260 = vpop.f32.mrb[0].mxu0
      %v1261 = vadd.f32 %v1088, %v1260
      %v1262 = vpop.f32.mrb[0].mxu0
      %v1263 = vpop.f32.mrb[0].mxu0
      %v1264 = vadd.f32 %v1088, %v1263
      %v1265 = vpop.f32.mrb[0].mxu0
      %1266 = vmatprep.mubr.bf16.mxu0 %v1048
      %1267 = vmatmul.mubr.bf16.gmra.mrb[0].mxu0 %v1047
      %v1268 = vpop.f32.mrb[0].mxu0
      %v1269 = vadd.f32 %v1088, %v1268
      %v1270 = vpop.f32.mrb[0].mxu0
      %v1271 = vpop.f32.mrb[0].mxu0
      %v1272 = vadd.f32 %v1088, %v1271
      %v1273 = vpop.f32.mrb[0].mxu0
      %1274 = vmatprep.mubr.bf16.mxu0 %v1050
      %1275 = vmatmul.mubr.bf16.gmra.mrb[0].mxu0 %v1049
      %v1276 = vpop.f32.mrb[0].mxu0
      %v1277 = vadd.f32 %v1088, %v1276
      %v1278 = vpop.f32.mrb[0].mxu0
      %v1279 = vpop.f32.mrb[0].mxu0
      %v1280 = vadd.f32 %v1088, %v1279
      %v1281 = vpop.f32.mrb[0].mxu0
      %1282 = vdwg.mxu0
      %1283 = vmax.xlane.f32.xlu0 %v1221
      %v1284 = vpop.xlane.xlu0 %1283
      %1285 = vmax.xlane.f32.xlu0 %v1224
      %v1286 = vpop.xlane.xlu0 %1285
      %1287 = vmax.xlane.f32.xlu0 %v1229
      %v1288 = vpop.xlane.xlu0 %1287
      %1289 = vmax.xlane.f32.xlu0 %v1232
      %v1290 = vpop.xlane.xlu0 %1289
      %1291 = vmax.xlane.f32.xlu0 %v1237
      %v1292 = vpop.xlane.xlu0 %1291
      %1293 = vmax.xlane.f32.xlu0 %v1240
      %v1294 = vpop.xlane.xlu0 %1293
      %1295 = vmax.xlane.f32.xlu0 %v1245
      %v1296 = vpop.xlane.xlu0 %1295
      %1297 = vmax.xlane.f32.xlu0 %v1248
      %v1298 = vpop.xlane.xlu0 %1297
      %1299 = vmax.xlane.f32.xlu0 %v1253
      %v1300 = vpop.xlane.xlu0 %1299
      %1301 = vmax.xlane.f32.xlu0 %v1256
      %v1302 = vpop.xlane.xlu0 %1301
      %1303 = vmax.xlane.f32.xlu0 %v1261
      %v1304 = vpop.xlane.xlu0 %1303
      %1305 = vmax.xlane.f32.xlu0 %v1264
      %v1306 = vpop.xlane.xlu0 %1305
      %1307 = vmax.xlane.f32.xlu0 %v1269
      %v1308 = vpop.xlane.xlu0 %1307
      %1309 = vmax.xlane.f32.xlu0 %v1272
      %v1310 = vpop.xlane.xlu0 %1309
      %1311 = vmax.xlane.f32.xlu0 %v1277
      %v1312 = vpop.xlane.xlu0 %1311
      %1313 = vmax.xlane.f32.xlu0 %v1280
      %v1314 = vpop.xlane.xlu0 %1313
      %v1315 = vsub.f32 %v1221, %v1284
      %v1316 = vsub.f32 %v1224, %v1286
      %v1317 = vsub.f32 %v1229, %v1288
      %v1318 = vsub.f32 %v1232, %v1290
      %v1319 = vsub.f32 %v1237, %v1292
      %v1320 = vsub.f32 %v1240, %v1294
      %v1321 = vsub.f32 %v1245, %v1296
      %v1322 = vsub.f32 %v1248, %v1298
      %v1323 = vsub.f32 %v1253, %v1300
      %v1324 = vsub.f32 %v1256, %v1302
      %v1325 = vsub.f32 %v1261, %v1304
      %v1326 = vsub.f32 %v1264, %v1306
      %v1327 = vsub.f32 %v1269, %v1308
      %v1328 = vsub.f32 %v1272, %v1310
      %v1329 = vsub.f32 %v1277, %v1312
      %v1330 = vsub.f32 %v1280, %v1314
      %v1331 = vmul.f32 %v1315, 1.442695
      %v1332 = vpow.pop %v1331
      %v1333 = vmul.f32 %v1316, 1.442695
      %v1334 = vpow.pop %v1333
      %v1335 = vmul.f32 %v1317, 1.442695
      %v1336 = vpow.pop %v1335
      %v1337 = vmul.f32 %v1318, 1.442695
      %v1338 = vpow.pop %v1337
      %v1339 = vmul.f32 %v1319, 1.442695
      %v1340 = vpow.pop %v1339
      %v1341 = vmul.f32 %v1320, 1.442695
      %v1342 = vpow.pop %v1341
      %v1343 = vmul.f32 %v1321, 1.442695
      %v1344 = vpow.pop %v1343
      %v1345 = vmul.f32 %v1322, 1.442695
      %v1346 = vpow.pop %v1345
      %v1347 = vmul.f32 %v1323, 1.442695
      %v1348 = vpow.pop %v1347
      %v1349 = vmul.f32 %v1324, 1.442695
      %v1350 = vpow.pop %v1349
      %v1351 = vmul.f32 %v1325, 1.442695
      %v1352 = vpow.pop %v1351
      %v1353 = vmul.f32 %v1326, 1.442695
      %v1354 = vpow.pop %v1353
      %v1355 = vmul.f32 %v1327, 1.442695
      %v1356 = vpow.pop %v1355
      %v1357 = vmul.f32 %v1328, 1.442695
      %v1358 = vpow.pop %v1357
      %v1359 = vmul.f32 %v1329, 1.442695
      %v1360 = vpow.pop %v1359
      %v1361 = vmul.f32 %v1330, 1.442695
      %v1362 = vpow.pop %v1361
      %1363 = vadd.xlane.f32.xlu0 %v1332
      %v1364 = vpop.xlane.xlu0 %1363
      %1365 = vadd.xlane.f32.xlu0 %v1334
      %v1366 = vpop.xlane.xlu0 %1365
      %1367 = vadd.xlane.f32.xlu0 %v1336
      %v1368 = vpop.xlane.xlu0 %1367
      %1369 = vadd.xlane.f32.xlu0 %v1338
      %v1370 = vpop.xlane.xlu0 %1369
      %1371 = vadd.xlane.f32.xlu0 %v1340
      %v1372 = vpop.xlane.xlu0 %1371
      %1373 = vadd.xlane.f32.xlu0 %v1342
      %v1374 = vpop.xlane.xlu0 %1373
      %1375 = vadd.xlane.f32.xlu0 %v1344
      %v1376 = vpop.xlane.xlu0 %1375
      %1377 = vadd.xlane.f32.xlu0 %v1346
      %v1378 = vpop.xlane.xlu0 %1377
      %1379 = vadd.xlane.f32.xlu0 %v1348
      %v1380 = vpop.xlane.xlu0 %1379
      %1381 = vadd.xlane.f32.xlu0 %v1350
      %v1382 = vpop.xlane.xlu0 %1381
      %1383 = vadd.xlane.f32.xlu0 %v1352
      %v1384 = vpop.xlane.xlu0 %1383
      %1385 = vadd.xlane.f32.xlu0 %v1354
      %v1386 = vpop.xlane.xlu0 %1385
      %1387 = vadd.xlane.f32.xlu0 %v1356
      %v1388 = vpop.xlane.xlu0 %1387
      %1389 = vadd.xlane.f32.xlu0 %v1358
      %v1390 = vpop.xlane.xlu0 %1389
      %1391 = vadd.xlane.f32.xlu0 %v1360
      %v1392 = vpop.xlane.xlu0 %1391
      %1393 = vadd.xlane.f32.xlu0 %v1362
      %v1394 = vpop.xlane.xlu0 %1393
      %v1395 = vlog2.pop %v1364
      %v1396 = vmul.f32 %v1395, 0.6931472
      %v1397 = vlog2.pop %v1366
      %v1398 = vmul.f32 %v1397, 0.6931472
      %v1399 = vlog2.pop %v1368
      %v1400 = vmul.f32 %v1399, 0.6931472
      %v1401 = vlog2.pop %v1370
      %v1402 = vmul.f32 %v1401, 0.6931472
      %v1403 = vlog2.pop %v1372
      %v1404 = vmul.f32 %v1403, 0.6931472
      %v1405 = vlog2.pop %v1374
      %v1406 = vmul.f32 %v1405, 0.6931472
      %v1407 = vlog2.pop %v1376
      %v1408 = vmul.f32 %v1407, 0.6931472
      %v1409 = vlog2.pop %v1378
      %v1410 = vmul.f32 %v1409, 0.6931472
      %v1411 = vlog2.pop %v1380
      %v1412 = vmul.f32 %v1411, 0.6931472
      %v1413 = vlog2.pop %v1382
      %v1414 = vmul.f32 %v1413, 0.6931472
      %v1415 = vlog2.pop %v1384
      %v1416 = vmul.f32 %v1415, 0.6931472
      %v1417 = vlog2.pop %v1386
      %v1418 = vmul.f32 %v1417, 0.6931472
      %v1419 = vlog2.pop %v1388
      %v1420 = vmul.f32 %v1419, 0.6931472
      %v1421 = vlog2.pop %v1390
      %v1422 = vmul.f32 %v1421, 0.6931472
      %v1423 = vlog2.pop %v1392
      %v1424 = vmul.f32 %v1423, 0.6931472
      %v1425 = vlog2.pop %v1394
      %v1426 = vmul.f32 %v1425, 0.6931472
      %v1427 = vsub.f32 %v1315, %v1396
      %v1428 = vsub.f32 %v1316, %v1398
      %v1429 = vsub.f32 %v1317, %v1400
      %v1430 = vsub.f32 %v1318, %v1402
      %v1431 = vsub.f32 %v1319, %v1404
      %v1432 = vsub.f32 %v1320, %v1406
      %v1433 = vsub.f32 %v1321, %v1408
      %v1434 = vsub.f32 %v1322, %v1410
      %v1435 = vsub.f32 %v1323, %v1412
      %v1436 = vsub.f32 %v1324, %v1414
      %v1437 = vsub.f32 %v1325, %v1416
      %v1438 = vsub.f32 %v1326, %v1418
      %v1439 = vsub.f32 %v1327, %v1420
      %v1440 = vsub.f32 %v1328, %v1422
      %v1441 = vsub.f32 %v1329, %v1424
      %v1442 = vsub.f32 %v1330, %v1426
      %1443 = vst [vmem:[%s350] sm:$0xff] %v1427
      %1444 = vst [vmem:[%s350 + $0x8] sm:$0xff] %v1428
      %1445 = vst [vmem:[%s350 + $0x10] sm:$0xff] %v1429
      %1446 = vst [vmem:[%s350 + $0x18] sm:$0xff] %v1430
      %1447 = vst [vmem:[%s350 + $0x20] sm:$0xff] %v1431
      %1448 = vst [vmem:[%s350 + $0x28] sm:$0xff] %v1432
      %1449 = vst [vmem:[%s350 + $0x30] sm:$0xff] %v1433
      %1450 = vst [vmem:[%s350 + $0x38] sm:$0xff] %v1434
      %1451 = vst [vmem:[%s350 + $0x40] sm:$0xff] %v1435
      %1452 = vst [vmem:[%s350 + $0x48] sm:$0xff] %v1436
      %1453 = vst [vmem:[%s350 + $0x50] sm:$0xff] %v1437
      %1454 = vst [vmem:[%s350 + $0x58] sm:$0xff] %v1438
      %1455 = vst [vmem:[%s350 + $0x60] sm:$0xff] %v1439
      %1456 = vst [vmem:[%s350 + $0x68] sm:$0xff] %v1440
      %1457 = vst [vmem:[%s350 + $0x70] sm:$0xff] %v1441
      %1458 = vst [vmem:[%s350 + $0x78] sm:$0xff] %v1442
      %v1459 = vrcp.pop 10.0
      %v1460 = vmul.f32 %v1315, %v1459
      %v1461 = vmul.f32 %v1316, %v1459
      %v1462 = vmul.f32 %v1317, %v1459
      %v1463 = vmul.f32 %v1318, %v1459
      %v1464 = vmul.f32 %v1319, %v1459
      %v1465 = vmul.f32 %v1320, %v1459
      %v1466 = vmul.f32 %v1321, %v1459
      %v1467 = vmul.f32 %v1322, %v1459
      %v1468 = vmul.f32 %v1323, %v1459
      %v1469 = vmul.f32 %v1324, %v1459
      %v1470 = vmul.f32 %v1325, %v1459
      %v1471 = vmul.f32 %v1326, %v1459
      %v1472 = vmul.f32 %v1327, %v1459
      %v1473 = vmul.f32 %v1328, %v1459
      %v1474 = vmul.f32 %v1329, %v1459
      %v1475 = vmul.f32 %v1330, %v1459
      %v1476 = vmul.f32 %v1460, 1.442695
      %v1477 = vpow.pop %v1476
      %v1478 = vmul.f32 %v1461, 1.442695
      %v1479 = vpow.pop %v1478
      %v1480 = vmul.f32 %v1462, 1.442695
      %v1481 = vpow.pop %v1480
      %v1482 = vmul.f32 %v1463, 1.442695
      %v1483 = vpow.pop %v1482
      %v1484 = vmul.f32 %v1464, 1.442695
      %v1485 = vpow.pop %v1484
      %v1486 = vmul.f32 %v1465, 1.442695
      %v1487 = vpow.pop %v1486
      %v1488 = vmul.f32 %v1466, 1.442695
      %v1489 = vpow.pop %v1488
      %v1490 = vmul.f32 %v1467, 1.442695
      %v1491 = vpow.pop %v1490
      %v1492 = vmul.f32 %v1468, 1.442695
      %v1493 = vpow.pop %v1492
      %v1494 = vmul.f32 %v1469, 1.442695
      %v1495 = vpow.pop %v1494
      %v1496 = vmul.f32 %v1470, 1.442695
      %v1497 = vpow.pop %v1496
      %v1498 = vmul.f32 %v1471, 1.442695
      %v1499 = vpow.pop %v1498
      %v1500 = vmul.f32 %v1472, 1.442695
      %v1501 = vpow.pop %v1500
      %v1502 = vmul.f32 %v1473, 1.442695
      %v1503 = vpow.pop %v1502
      %v1504 = vmul.f32 %v1474, 1.442695
      %v1505 = vpow.pop %v1504
      %v1506 = vmul.f32 %v1475, 1.442695
      %v1507 = vpow.pop %v1506
      %1508 = vadd.xlane.f32.xlu0 %v1477
      %v1509 = vpop.xlane.xlu0 %1508
      %1510 = vadd.xlane.f32.xlu0 %v1479
      %v1511 = vpop.xlane.xlu0 %1510
      %1512 = vadd.xlane.f32.xlu0 %v1481
      %v1513 = vpop.xlane.xlu0 %1512
      %1514 = vadd.xlane.f32.xlu0 %v1483
      %v1515 = vpop.xlane.xlu0 %1514
      %1516 = vadd.xlane.f32.xlu0 %v1485
      %v1517 = vpop.xlane.xlu0 %1516
      %1518 = vadd.xlane.f32.xlu0 %v1487
      %v1519 = vpop.xlane.xlu0 %1518
      %1520 = vadd.xlane.f32.xlu0 %v1489
      %v1521 = vpop.xlane.xlu0 %1520
      %1522 = vadd.xlane.f32.xlu0 %v1491
      %v1523 = vpop.xlane.xlu0 %1522
      %1524 = vadd.xlane.f32.xlu0 %v1493
      %v1525 = vpop.xlane.xlu0 %1524
      %1526 = vadd.xlane.f32.xlu0 %v1495
      %v1527 = vpop.xlane.xlu0 %1526
      %1528 = vadd.xlane.f32.xlu0 %v1497
      %v1529 = vpop.xlane.xlu0 %1528
      %1530 = vadd.xlane.f32.xlu0 %v1499
      %v1531 = vpop.xlane.xlu0 %1530
      %1532 = vadd.xlane.f32.xlu0 %v1501
      %v1533 = vpop.xlane.xlu0 %1532
      %1534 = vadd.xlane.f32.xlu0 %v1503
      %v1535 = vpop.xlane.xlu0 %1534
      %1536 = vadd.xlane.f32.xlu0 %v1505
      %v1537 = vpop.xlane.xlu0 %1536
      %1538 = vadd.xlane.f32.xlu0 %v1507
      %v1539 = vpop.xlane.xlu0 %1538
      %v1540 = vlog2.pop %v1509
      %v1541 = vmul.f32 %v1540, 0.6931472
      %v1542 = vlog2.pop %v1511
      %v1543 = vmul.f32 %v1542, 0.6931472
      %v1544 = vlog2.pop %v1513
      %v1545 = vmul.f32 %v1544, 0.6931472
      %v1546 = vlog2.pop %v1515
      %v1547 = vmul.f32 %v1546, 0.6931472
      %v1548 = vlog2.pop %v1517
      %v1549 = vmul.f32 %v1548, 0.6931472
      %v1550 = vlog2.pop %v1519
      %v1551 = vmul.f32 %v1550, 0.6931472
      %v1552 = vlog2.pop %v1521
      %v1553 = vmul.f32 %v1552, 0.6931472
      %v1554 = vlog2.pop %v1523
      %v1555 = vmul.f32 %v1554, 0.6931472
      %v1556 = vlog2.pop %v1525
      %v1557 = vmul.f32 %v1556, 0.6931472
      %v1558 = vlog2.pop %v1527
      %v1559 = vmul.f32 %v1558, 0.6931472
      %v1560 = vlog2.pop %v1529
      %v1561 = vmul.f32 %v1560, 0.6931472
      %v1562 = vlog2.pop %v1531
      %v1563 = vmul.f32 %v1562, 0.6931472
      %v1564 = vlog2.pop %v1533
      %v1565 = vmul.f32 %v1564, 0.6931472
      %v1566 = vlog2.pop %v1535
      %v1567 = vmul.f32 %v1566, 0.6931472
      %v1568 = vlog2.pop %v1537
      %v1569 = vmul.f32 %v1568, 0.6931472
      %v1570 = vlog2.pop %v1539
      %v1571 = vmul.f32 %v1570, 0.6931472
      %v1572 = vsub.f32 %v1460, %v1541
      %v1573 = vsub.f32 %v1461, %v1543
      %v1574 = vsub.f32 %v1462, %v1545
      %v1575 = vsub.f32 %v1463, %v1547
      %v1576 = vsub.f32 %v1464, %v1549
      %v1577 = vsub.f32 %v1465, %v1551
      %v1578 = vsub.f32 %v1466, %v1553
      %v1579 = vsub.f32 %v1467, %v1555
      %v1580 = vsub.f32 %v1468, %v1557
      %v1581 = vsub.f32 %v1469, %v1559
      %v1582 = vsub.f32 %v1470, %v1561
      %v1583 = vsub.f32 %v1471, %v1563
      %v1584 = vsub.f32 %v1472, %v1565
      %v1585 = vsub.f32 %v1473, %v1567
      %v1586 = vsub.f32 %v1474, %v1569
      %v1587 = vsub.f32 %v1475, %v1571
      %1588 = vst [vmem:[%s363] sm:$0xff] %v1572
      %1589 = vst [vmem:[%s363 + $0x8] sm:$0xff] %v1573
      %1590 = vst [vmem:[%s363 + $0x10] sm:$0xff] %v1574
      %1591 = vst [vmem:[%s363 + $0x18] sm:$0xff] %v1575
      %1592 = vst [vmem:[%s363 + $0x20] sm:$0xff] %v1576
      %1593 = vst [vmem:[%s363 + $0x28] sm:$0xff] %v1577
      %1594 = vst [vmem:[%s363 + $0x30] sm:$0xff] %v1578
      %1595 = vst [vmem:[%s363 + $0x38] sm:$0xff] %v1579
      %1596 = vst [vmem:[%s363 + $0x40] sm:$0xff] %v1580
      %1597 = vst [vmem:[%s363 + $0x48] sm:$0xff] %v1581
      %1598 = vst [vmem:[%s363 + $0x50] sm:$0xff] %v1582
      %1599 = vst [vmem:[%s363 + $0x58] sm:$0xff] %v1583
      %1600 = vst [vmem:[%s363 + $0x60] sm:$0xff] %v1584
      %1601 = vst [vmem:[%s363 + $0x68] sm:$0xff] %v1585
      %1602 = vst [vmem:[%s363 + $0x70] sm:$0xff] %v1586
      %1603 = vst [vmem:[%s363 + $0x78] sm:$0xff] %v1587
      %s1604 = smul.u32 16, %s21
      %p1605 = scmp.lt.s32.totalorder %s1604, 31
      %s1606 = scalar_select %p1605, %s1604, 31
      %s1607 = smul.addr %s1606, 8
      %s1608 = scalar_lea.vmem %s7, %s1607
      %s1609 = smul.u32 16, %s21
      %p1610 = scmp.lt.s32.totalorder %s1609, 31
      %s1611 = scalar_select %p1610, %s1609, 31
      %s1612 = smul.addr %s1611, 2
      %s1613 = smul.addr %s1612, 8
      %s1614 = scalar_lea.vmem %s8, %s1613
      %s1615 = smul.u32 16, %s21
      %p1616 = scmp.lt.s32.totalorder %s1615, 31
      %s1617 = scalar_select %p1616, %s1615, 31
      %s1618 = smul.addr %s1617, 8
      %s1619 = scalar_lea.vmem %s9, %s1618
      // Predicated region
      $region49: #{_dann_forward_impl.1} parent=47 // pred_check
        %p1620 = pneg %p191
      $region50: #{_dann_forward_impl.1} parent=47 // pred_check_branch
        %1622 = sbr.rel (%p1620) target = $region52
      $region51: #{_dann_forward_impl.1} parent=47 // pred_region
        %s1623 = smul.u32 16, %s21
      $region52: #{_dann_forward_impl.1} parent=47 // pred_fallthru
        _
      // Predicated region
      $region53: #{_dann_forward_impl.1} parent=47 // pred_check
        %p1624 = pneg %p217
      $region54: #{_dann_forward_impl.1} parent=47 // pred_check_branch
        %1626 = sbr.rel (%p1624) target = $region56
      $region55: #{_dann_forward_impl.1} parent=47 // pred_region
        %s1627 = smul.u32 16, %s21
      $region56: #{_dann_forward_impl.1} parent=47 // pred_fallthru
        _
      // Predicated region
      $region57: #{_dann_forward_impl.1} parent=47 // pred_check
        %p1628 = pneg %p243
      $region58: #{_dann_forward_impl.1} parent=47 // pred_check_branch
        %1630 = sbr.rel (%p1628) target = $region60
      $region59: #{_dann_forward_impl.1} parent=47 // pred_region
        %s1631 = smul.u32 16, %s21
      $region60: #{_dann_forward_impl.1} parent=47 // pred_fallthru
        _
    $region48: #{_dann_forward_impl.1} parent=5 // pred_fallthru
      _
    %p1632 = scmp.le.s32.totalorder 2, %s16
    // Predicated region
    $region61: #{_dann_forward_impl.1} parent=5 // pred_check
      %p1633 = pneg %p1632
    $region62: #{_dann_forward_impl.1} parent=5 // pred_check_branch
      %1635 = sbr.rel (%p1633) target = $region64
    $region63: #{_dann_forward_impl.1} parent=5 // pred_region
      %s1636 = ssub.s32 %s16, 2
      // Predicated region
      $region65: #{_dann_forward_impl.1} parent=63 // pred_check
        %p1637 = pneg %p197
      $region66: #{_dann_forward_impl.1} parent=63 // pred_check_branch
        %1639 = sbr.rel (%p1637) target = $region68
      $region67: #{_dann_forward_impl.1} parent=63 // pred_region
        %s1640 = smul.u32 16, %s22
        %p1641 = scmp.lt.s32.totalorder %s1640, 31
        %s1642 = scalar_select %p1641, %s1640, 31
        %s1643 = smul.addr %s1642, 8
        %s1644 = scalar_lea.vmem %s7, %s1643
      $region68: #{_dann_forward_impl.1} parent=63 // pred_fallthru
        _
      // Predicated region
      $region69: #{_dann_forward_impl.1} parent=63 // pred_check
        %p1645 = pneg %p223
      $region70: #{_dann_forward_impl.1} parent=63 // pred_check_branch
        %1647 = sbr.rel (%p1645) target = $region72
      $region71: #{_dann_forward_impl.1} parent=63 // pred_region
        %s1648 = smul.u32 16, %s22
        %p1649 = scmp.lt.s32.totalorder %s1648, 31
        %s1650 = scalar_select %p1649, %s1648, 31
        %s1651 = smul.addr %s1650, 2
        %s1652 = smul.addr %s1651, 8
        %s1653 = scalar_lea.vmem %s8, %s1652
      $region72: #{_dann_forward_impl.1} parent=63 // pred_fallthru
        _
      // Predicated region
      $region73: #{_dann_forward_impl.1} parent=63 // pred_check
        %p1654 = pneg %p249
      $region74: #{_dann_forward_impl.1} parent=63 // pred_check_branch
        %1656 = sbr.rel (%p1654) target = $region76
      $region75: #{_dann_forward_impl.1} parent=63 // pred_region
        %s1657 = smul.u32 16, %s22
        %p1658 = scmp.lt.s32.totalorder %s1657, 31
        %s1659 = scalar_select %p1658, %s1657, 31
        %s1660 = smul.addr %s1659, 8
        %s1661 = scalar_lea.vmem %s9, %s1660
      $region76: #{_dann_forward_impl.1} parent=63 // pred_fallthru
        _
    $region64: #{_dann_forward_impl.1} parent=5 // pred_fallthru
      _
  $region6: #{_dann_forward_impl.1} parent=0 // loop_footer
    %s20 = sadd.s32 1, %s16
  $region7: #{_dann_forward_impl.1} parent=0 // loop_footer_branch
    %15 = sbr.rel target = $region3
  $region8: #{_dann_forward_impl.1} parent=0 // loop_exit
    _

</llo_original>
